<compile_context>
chip_gen: v6e
topology: v6e:2x2x1
jax: 0.10.0
libtpu: 0.0.40
codegen_flags: <defaults>
</compile_context>

<pallas_src>
import functools

import jax
import jax.numpy as jnp
from jax.experimental import pallas as pl
from jax.experimental.pallas import tpu as pltpu

# Raise the scoped VMEM limit so large tiles can double-buffer at realistic
# sizes (defaults: 16 MiB on v5e, 32 MiB on v6e/v7x scoped limits).
_VMEM_LIMIT_BYTES = 64 * 1024 * 1024


def _pack_weight(w_hwio):
    """(3, 3, Cin, Cout) HWIO -> (Cout, 9*Cin), tap-major / channel-minor, f32."""
    kh, kw, cin, cout = w_hwio.shape
    return jnp.transpose(w_hwio, (3, 0, 1, 2)).reshape(cout, kh * kw * cin).astype(jnp.float32)


def _im2col_conv3x3(x, w, ho, wo):
    """3x3 'valid' (pad=0, stride=1) conv as one MXU contraction.

    x: (Cin, H, W) f32 values, w: (Cout, 9*Cin) f32 values -> (Cout, Ho*Wo) f32.
    """
    cin = x.shape[0]
    taps = [x[:, di:di + ho, dj:dj + wo].reshape(cin, ho * wo)
            for di in range(3) for dj in range(3)]
    patches = jnp.concatenate(taps, axis=0)                  # (9*Cin, Ho*Wo)
    return jnp.dot(w, patches, preferred_element_type=jnp.float32)


def _channel_stats(y):
    """Per-channel [sum, sum_of_squares]: y (Cout, M) -> (Cout, 2)."""
    ssum = jnp.sum(y, axis=1, keepdims=True)
    ssq = jnp.sum(y * y, axis=1, keepdims=True)
    return jnp.concatenate([ssum, ssq], axis=1)


def _conv_bnstats_kernel(x_ref, w_ref, y_ref, stats_ref, *, ho, wo):
    """Conv3x3(valid) + per-batch-element BN partial stats.

    x_ref: (1, Cin, H, W)   w_ref: (Cout, 9*Cin)
    y_ref: (1, Cout, Ho*Wo) stats_ref: (1, Cout, 2)
    """
    x = x_ref[0].astype(jnp.float32)
    w = w_ref[...]                                           # hoisted weight load
    y = _im2col_conv3x3(x, w, ho, wo)
    y_ref[0] = y.astype(y_ref.dtype)
    stats_ref[0] = _channel_stats(y)


def _bn_act_conv_bnstats_kernel(x_ref, scale_ref, shift_ref, w_ref, y_ref,
                                stats_ref, *, ho, wo, slope):
    """BN affine (precomputed scale/shift) + LeakyReLU + Conv3x3 + partial stats.

    x_ref: (1, Cin, H, W); scale/shift: (Cin, 1, W) f32 (sublane-broadcast).
    """
    x = x_ref[0].astype(jnp.float32)                         # (Cin, H, W)
    z = x * scale_ref[...] + shift_ref[...]
    z = jnp.where(z >= 0.0, z, slope * z)
    w = w_ref[...]
    y = _im2col_conv3x3(z, w, ho, wo)
    y_ref[0] = y.astype(y_ref.dtype)
    stats_ref[0] = _channel_stats(y)


def _bn_lrelu_kernel(y_ref, scale_ref, shift_ref, o_ref, *, slope):
    """Final normalize + LeakyReLU. y_ref/o_ref: (1, C, HW); scale/shift: (C, 1) f32."""
    z = y_ref[0].astype(jnp.float32) * scale_ref[...] + shift_ref[...]
    o_ref[0] = jnp.where(z >= 0.0, z, slope * z).astype(o_ref.dtype)


def conv3x3_bnstats(x_nchw, wmat):
    n, cin, h, wd = x_nchw.shape
    cout = wmat.shape[0]
    ho, wo = h - 2, wd - 2
    kern = functools.partial(_conv_bnstats_kernel, ho=ho, wo=wo)
    return pl.pallas_call(
        kern,
        out_shape=(jax.ShapeDtypeStruct((n, cout, ho * wo), x_nchw.dtype),
                   jax.ShapeDtypeStruct((n, cout, 2), jnp.float32)),
        grid=(n,),
        in_specs=[
            pl.BlockSpec((1, cin, h, wd), lambda b: (b, 0, 0, 0)),
            pl.BlockSpec((cout, 9 * cin), lambda b: (0, 0)),
        ],
        out_specs=(
            pl.BlockSpec((1, cout, ho * wo), lambda b: (b, 0, 0)),
            pl.BlockSpec((1, cout, 2), lambda b: (b, 0, 0)),
        ),
        compiler_params=pltpu.CompilerParams(
            dimension_semantics=("parallel",),
            vmem_limit_bytes=_VMEM_LIMIT_BYTES),
    )(x_nchw, wmat)


def bn_lrelu_conv3x3_bnstats(x_nchw, scale, shift, wmat, slope=0.01):
    n, cin, h, wd = x_nchw.shape
    cout = wmat.shape[0]
    ho, wo = h - 2, wd - 2
    scale_b = jnp.broadcast_to(scale.reshape(cin, 1, 1), (cin, 1, wd)).astype(jnp.float32)
    shift_b = jnp.broadcast_to(shift.reshape(cin, 1, 1), (cin, 1, wd)).astype(jnp.float32)
    kern = functools.partial(_bn_act_conv_bnstats_kernel, ho=ho, wo=wo, slope=slope)
    return pl.pallas_call(
        kern,
        out_shape=(jax.ShapeDtypeStruct((n, cout, ho * wo), x_nchw.dtype),
                   jax.ShapeDtypeStruct((n, cout, 2), jnp.float32)),
        grid=(n,),
        in_specs=[
            pl.BlockSpec((1, cin, h, wd), lambda b: (b, 0, 0, 0)),
            pl.BlockSpec((cin, 1, wd), lambda b: (0, 0, 0)),
            pl.BlockSpec((cin, 1, wd), lambda b: (0, 0, 0)),
            pl.BlockSpec((cout, 9 * cin), lambda b: (0, 0)),
        ],
        out_specs=(
            pl.BlockSpec((1, cout, ho * wo), lambda b: (b, 0, 0)),
            pl.BlockSpec((1, cout, 2), lambda b: (b, 0, 0)),
        ),
        compiler_params=pltpu.CompilerParams(
            dimension_semantics=("parallel",),
            vmem_limit_bytes=_VMEM_LIMIT_BYTES),
    )(x_nchw, scale_b, shift_b, wmat)


def bn_lrelu(y_flat, scale, shift, slope=0.01):
    n, c, hw = y_flat.shape
    kern = functools.partial(_bn_lrelu_kernel, slope=slope)
    return pl.pallas_call(
        kern,
        out_shape=jax.ShapeDtypeStruct((n, c, hw), y_flat.dtype),
        grid=(n,),
        in_specs=[
            pl.BlockSpec((1, c, hw), lambda b: (b, 0, 0)),
            pl.BlockSpec((c, 1), lambda b: (0, 0)),
            pl.BlockSpec((c, 1), lambda b: (0, 0)),
        ],
        out_specs=pl.BlockSpec((1, c, hw), lambda b: (b, 0, 0)),
        compiler_params=pltpu.CompilerParams(
            dimension_semantics=("parallel",),
            vmem_limit_bytes=_VMEM_LIMIT_BYTES),
    )(y_flat, scale.reshape(c, 1).astype(jnp.float32),
      shift.reshape(c, 1).astype(jnp.float32))


def _bn_scale_shift(stats, count, gamma, beta, eps):
    """stats: (N, C, 2) partial [sum, sumsq] -> fused BN scale/shift (f32)."""
    total = jnp.sum(stats.astype(jnp.float32), axis=0)       # (C, 2)
    mean = total[:, 0] / count
    var = jnp.maximum(total[:, 1] / count - mean * mean, 0.0)  # biased (training) var
    scale = gamma.astype(jnp.float32) * jax.lax.rsqrt(var + eps)
    shift = beta.astype(jnp.float32) - mean * scale
    return scale, shift


def cnn_block_forward(x_nchw, params, eps=1e-5, slope=0.01):
    """CNNBlock.forward (upsample=False): [Conv3x3 -> BN -> LeakyReLU] x 2."""
    n, _, h, wd = x_nchw.shape
    wmat1 = _pack_weight(params["w1"])
    wmat2 = _pack_weight(params["w2"])
    cout = wmat1.shape[0]
    ho1, wo1 = h - 2, wd - 2
    ho2, wo2 = ho1 - 2, wo1 - 2

    # Layer 1: conv fused with per-batch BN partial stats.
    y1, s1 = conv3x3_bnstats(x_nchw, wmat1)                  # (n, cout, ho1*wo1)
    scale1, shift1 = _bn_scale_shift(s1, float(n * ho1 * wo1),
                                     params["gamma1"], params["beta1"], eps)

    # Layer 2: layer-1 normalize+LeakyReLU fused into conv2 (+ its BN stats).
    y1_img = y1.reshape(n, cout, ho1, wo1)                   # metadata-only reshape
    y2, s2 = bn_lrelu_conv3x3_bnstats(y1_img, scale1, shift1, wmat2, slope)
    scale2, shift2 = _bn_scale_shift(s2, float(n * ho2 * wo2),
                                     params["gamma2"], params["beta2"], eps)

    # Final normalize + LeakyReLU (batch-tiled, lane-dense layout).
    out = bn_lrelu(y2, scale2, shift2, slope)                # (n, cout, ho2*wo2)
    return out.reshape(n, cout, ho2, wo2)                    # NCHW


def _reference_forward(x_nchw, params):
    """Pure-JAX reference (lax.conv) to validate the Pallas kernels."""
    x = jnp.transpose(x_nchw, (0, 2, 3, 1))

    def conv(y, w):
        return jax.lax.conv_general_dilated(
            y, w, window_strides=(1, 1), padding="VALID",
            dimension_numbers=("NHWC", "HWIO", "NHWC"))

    def bn_lrelu_ref(y, g, b):
        mean = jnp.mean(y, axis=(0, 1, 2), keepdims=True)
        var = jnp.mean((y - mean) ** 2, axis=(0, 1, 2), keepdims=True)
        z = (y - mean) * jax.lax.rsqrt(var + 1e-5)
        z = z * g.reshape(1, 1, 1, -1) + b.reshape(1, 1, 1, -1)
        return jnp.where(z >= 0.0, z, 0.01 * z)

    y = bn_lrelu_ref(conv(x, params["w1"]), params["gamma1"], params["beta1"])
    y = bn_lrelu_ref(conv(y, params["w2"]), params["gamma2"], params["beta2"])
    return jnp.transpose(y, (0, 3, 1, 2))


if __name__ == "__main__":
    in_channels, out_channels = 4, 8
    N, H, W = 2, 16, 16

    key = jax.random.PRNGKey(0)
    kx, kw1, kw2 = jax.random.split(key, 3)
    x = jax.random.normal(kx, (N, in_channels, H, W), dtype=jnp.float32)

    # Deterministic synthetic parameters (PyTorch Conv2d weights are OIHW; convert to HWIO).
    w1_oihw = 0.1 * jax.random.normal(kw1, (out_channels, in_channels, 3, 3), jnp.float32)
    w2_oihw = 0.1 * jax.random.normal(kw2, (out_channels, out_channels, 3, 3), jnp.float32)
    params = {
        "w1": jnp.transpose(w1_oihw, (2, 3, 1, 0)),
        "w2": jnp.transpose(w2_oihw, (2, 3, 1, 0)),
        # BatchNorm2d default affine init: weight=1, bias=0.
        "gamma1": jnp.ones((out_channels,), jnp.float32),
        "beta1": jnp.zeros((out_channels,), jnp.float32),
        "gamma2": jnp.ones((out_channels,), jnp.float32),
        "beta2": jnp.zeros((out_channels,), jnp.float32),
    }

    out = jax.block_until_ready(cnn_block_forward(x, params))
    assert out.shape == (N, out_channels, H - 4, W - 4), out.shape

    ref = jax.block_until_ready(_reference_forward(x, params))
    max_err = float(jnp.max(jnp.abs(out - ref)))
    assert jnp.allclose(out, ref, atol=1e-4, rtol=1e-4), f"max_err={max_err}"

    print("KERNEL_OK")
</pallas_src>

<mosaic_0001>
module attributes {stable_mosaic.version = 11 : i64} {
  func.func @_conv_bnstats_kernel(%arg0: i32, %arg1: memref<1x4x16x16xf32, #tpu.memory_space<vmem>>, %arg2: memref<8x36xf32, #tpu.memory_space<vmem>>, %arg3: memref<1x8x196xf32, #tpu.memory_space<vmem>>, %arg4: memref<1x8x2xf32, #tpu.memory_space<vmem>>) attributes {dimension_semantics = [#tpu.dimension_semantics<parallel>], iteration_bounds = array<i64: 2>, scalar_prefetch = 0 : i64, scratch_operands = 0 : i64, tpu.core_type = #tpu.core_type<tc>, window_params = [{transform_indices = @transform_0, window_bounds = array<i64: 1, 4, 16, 16>}, {pipeline_mode = #tpu.pipeline_mode<synchronous>, transform_indices = @transform_1, window_bounds = array<i64: 8, 36>}, {transform_indices = @transform_2, window_bounds = array<i64: 1, 8, 196>}, {transform_indices = @transform_3, window_bounds = array<i64: 1, 8, 2>}]} {
    %c0 = arith.constant 0 : index
    %c0_0 = arith.constant 0 : index
    %c0_1 = arith.constant 0 : index
    %c0_2 = arith.constant 0 : index
    %0 = vector.load %arg1[%c0, %c0_0, %c0_1, %c0_2] : memref<1x4x16x16xf32, #tpu.memory_space<vmem>>, vector<1x4x16x16xf32>
    %1 = vector.shape_cast %0 : vector<1x4x16x16xf32> to vector<4x16x16xf32>
    %c0_3 = arith.constant 0 : index
    %c0_4 = arith.constant 0 : index
    %2 = vector.load %arg2[%c0_3, %c0_4] : memref<8x36xf32, #tpu.memory_space<vmem>>, vector<8x36xf32>
    %3 = vector.extract_strided_slice %1 {offsets = [0, 0, 0], sizes = [4, 14, 14], strides = [1, 1, 1]} : vector<4x16x16xf32> to vector<4x14x14xf32>
    %4 = vector.shape_cast %3 : vector<4x14x14xf32> to vector<4x196xf32>
    %5 = vector.extract_strided_slice %1 {offsets = [0, 0, 1], sizes = [4, 14, 14], strides = [1, 1, 1]} : vector<4x16x16xf32> to vector<4x14x14xf32>
    %6 = vector.shape_cast %5 : vector<4x14x14xf32> to vector<4x196xf32>
    %7 = vector.extract_strided_slice %1 {offsets = [0, 0, 2], sizes = [4, 14, 14], strides = [1, 1, 1]} : vector<4x16x16xf32> to vector<4x14x14xf32>
    %8 = vector.shape_cast %7 : vector<4x14x14xf32> to vector<4x196xf32>
    %9 = vector.extract_strided_slice %1 {offsets = [0, 1, 0], sizes = [4, 14, 14], strides = [1, 1, 1]} : vector<4x16x16xf32> to vector<4x14x14xf32>
    %10 = vector.shape_cast %9 : vector<4x14x14xf32> to vector<4x196xf32>
    %11 = vector.extract_strided_slice %1 {offsets = [0, 1, 1], sizes = [4, 14, 14], strides = [1, 1, 1]} : vector<4x16x16xf32> to vector<4x14x14xf32>
    %12 = vector.shape_cast %11 : vector<4x14x14xf32> to vector<4x196xf32>
    %13 = vector.extract_strided_slice %1 {offsets = [0, 1, 2], sizes = [4, 14, 14], strides = [1, 1, 1]} : vector<4x16x16xf32> to vector<4x14x14xf32>
    %14 = vector.shape_cast %13 : vector<4x14x14xf32> to vector<4x196xf32>
    %15 = vector.extract_strided_slice %1 {offsets = [0, 2, 0], sizes = [4, 14, 14], strides = [1, 1, 1]} : vector<4x16x16xf32> to vector<4x14x14xf32>
    %16 = vector.shape_cast %15 : vector<4x14x14xf32> to vector<4x196xf32>
    %17 = vector.extract_strided_slice %1 {offsets = [0, 2, 1], sizes = [4, 14, 14], strides = [1, 1, 1]} : vector<4x16x16xf32> to vector<4x14x14xf32>
    %18 = vector.shape_cast %17 : vector<4x14x14xf32> to vector<4x196xf32>
    %19 = vector.extract_strided_slice %1 {offsets = [0, 2, 2], sizes = [4, 14, 14], strides = [1, 1, 1]} : vector<4x16x16xf32> to vector<4x14x14xf32>
    %20 = vector.shape_cast %19 : vector<4x14x14xf32> to vector<4x196xf32>
    %21 = tpu.concatenate %4, %6, %8, %10, %12, %14, %16, %18, %20 in 0 : vector<4x196xf32>, vector<4x196xf32>, vector<4x196xf32>, vector<4x196xf32>, vector<4x196xf32>, vector<4x196xf32>, vector<4x196xf32>, vector<4x196xf32>, vector<4x196xf32> -> vector<36x196xf32>
    %cst = arith.constant dense<0.000000e+00> : vector<8x196xf32>
    %22 = tpu.matmul %2, %21, %cst {dimension_numbers = #tpu.dot_dimension_numbers<[1], [0], [0], [1], [0, 0, 1, 1], [], []>} : vector<8x36xf32>, vector<36x196xf32>, vector<8x196xf32> -> vector<8x196xf32>
    %c0_5 = arith.constant 0 : index
    %c0_6 = arith.constant 0 : index
    %c0_7 = arith.constant 0 : index
    %23 = vector.load %arg3[%c0_5, %c0_6, %c0_7] : memref<1x8x196xf32, #tpu.memory_space<vmem>>, vector<1x8x196xf32>
    %24 = vector.shape_cast %23 : vector<1x8x196xf32> to vector<8x196xf32>
    %25 = vector.shape_cast %22 : vector<8x196xf32> to vector<1x8x196xf32>
    tpu.vector_store %arg3[%c0_5, %c0_6, %c0_7], %25 {strides = array<i32>} : memref<1x8x196xf32, #tpu.memory_space<vmem>>, vector<1x8x196xf32>,
    %cst_8 = arith.constant dense<0.000000e+00> : vector<8xf32>
    %26 = vector.multi_reduction <add>, %22, %cst_8 [1] : vector<8x196xf32> to vector<8xf32>
    %27 = vector.shape_cast %26 : vector<8xf32> to vector<8x1xf32>
    %28 = arith.mulf %22, %22 : vector<8x196xf32>
    %cst_9 = arith.constant dense<0.000000e+00> : vector<8xf32>
    %29 = vector.multi_reduction <add>, %28, %cst_9 [1] : vector<8x196xf32> to vector<8xf32>
    %30 = vector.shape_cast %29 : vector<8xf32> to vector<8x1xf32>
    %31 = tpu.concatenate %27, %30 in 1 : vector<8x1xf32>, vector<8x1xf32> -> vector<8x2xf32>
    %c0_10 = arith.constant 0 : index
    %c0_11 = arith.constant 0 : index
    %c0_12 = arith.constant 0 : index
    %32 = vector.load %arg4[%c0_10, %c0_11, %c0_12] : memref<1x8x2xf32, #tpu.memory_space<vmem>>, vector<1x8x2xf32>
    %33 = vector.shape_cast %32 : vector<1x8x2xf32> to vector<8x2xf32>
    %34 = vector.shape_cast %31 : vector<8x2xf32> to vector<1x8x2xf32>
    tpu.vector_store %arg4[%c0_10, %c0_11, %c0_12], %34 {strides = array<i32>} : memref<1x8x2xf32, #tpu.memory_space<vmem>>, vector<1x8x2xf32>,
    return
  }
  func.func @transform_0(%arg0: i32) -> (i32, i32, i32, i32) {
    %c0_i32 = arith.constant 0 : i32
    %c0_i32_0 = arith.constant 0 : i32
    %c0_i32_1 = arith.constant 0 : i32
    %c0_i32_2 = arith.constant 0 : i32
    return %arg0, %c0_i32, %c0_i32_0, %c0_i32_1 : i32, i32, i32, i32
  }
  func.func @transform_1(%arg0: i32) -> (i32, i32) {
    %c0_i32 = arith.constant 0 : i32
    %c0_i32_0 = arith.constant 0 : i32
    %c0_i32_1 = arith.constant 0 : i32
    return %c0_i32, %c0_i32_0 : i32, i32
  }
  func.func @transform_2(%arg0: i32) -> (i32, i32, i32) {
    %c0_i32 = arith.constant 0 : i32
    %c0_i32_0 = arith.constant 0 : i32
    %c0_i32_1 = arith.constant 0 : i32
    return %arg0, %c0_i32, %c0_i32_0 : i32, i32, i32
  }
  func.func @transform_3(%arg0: i32) -> (i32, i32, i32) {
    %c0_i32 = arith.constant 0 : i32
    %c0_i32_0 = arith.constant 0 : i32
    %c0_i32_1 = arith.constant 0 : i32
    return %arg0, %c0_i32, %c0_i32_0 : i32, i32, i32
  }
}

</mosaic_0001>

<llo_original>
// kernel: tpu_custom_call.1
$region0: #{tpu_custom_call.1}
  #allocation0 [shape = 'u32[]', space=smem, size = 0x4, offset = 0x4, fixed_abs, tag = 'smem constant byte address 0x4 - core index']
  #allocation1 [shape = 'u32[144,128]{1,0:T(1,128)}', space=vmem, size = 0x12000, scoped, tag = 'internal scratch']
  %s0 = inlined_call_operand.hbm [shape: f32[2,4,16,16], index: 0, kind: input, shape index: {}]
  %s1 = inlined_call_operand.hbm [shape: f32[8,36], index: 1, kind: input, shape index: {}]
  %s2 = inlined_call_operand.hbm [shape: f32[2,8,196], index: 2, kind: output, shape index: {0}]
  %s3 = inlined_call_operand.vmem [shape: f32[2,8,2], index: 3, kind: output, shape index: {1}]
  %4 = xla_tuple %s2, %s3
  %s5 = sld [smem:[#allocation0]]
  $region57: #{tpu_custom_call.1} parent=0
    _
  %s7 = ssub.s32 1, %s5
  %s8 = scalar_select 0, %s7, %s5
  $region1: #{tpu_custom_call.1} parent=0
    #allocation2 [shape = 'u8[65536]{0}', space=vmem, size = 0x10000, scoped, tag = 'input window, operand 0']
    #allocation3 [shape = 's32[2]{0}', space=sflag, size = 0x8, scoped, tag = 'scoped memory for tpu_custom_call.1']
    #allocation4 [shape = 's32[2]{0}', space=sflag, size = 0x8, scoped, tag = 'scoped memory for tpu_custom_call.1']
    #allocation5 [shape = 'u8[4096]{0}', space=vmem, size = 0x1000, scoped, tag = 'input window, operand 1, single buffered']
    #allocation6 [shape = 's32[1]{0}', space=sflag, size = 0x4, scoped, tag = 'scoped memory for tpu_custom_call.1']
    #allocation7 [shape = 'u8[16384]{0}', space=vmem, size = 0x4000, scoped, tag = 'output window, operand 0']
    %9 = vsyncpa [#allocation3], 0
    %s10 = scalar_lea.sflag [#allocation3], 1
    %11 = vsyncpa %s10, 0
    %12 = vsyncpa [#allocation6], 0
    %13 = vsyncpa [#allocation4], 0
    %s14 = scalar_lea.sflag [#allocation4], 1
    %15 = vsyncpa %s14, 0
    loop: start=0, step=1, limit=4
    $region2: #{tpu_custom_call.1} parent=1 // loop_pre_header
      _
    $region3: #{tpu_custom_call.1} parent=1 // loop_header
      %s17 = sphi 0, %s21
      %p18 = scmp.ge.s32.totalorder %s17, 4
      %s27 = sphi 0, %s29
      %s30 = sphi 0, %s27
      %s31 = sphi 0, %s30
      %s47 = sphi 0, %s31
      %s51 = sphi 0, %s51
      %s53 = sphi 0, %s51
      %s54 = sphi 0, %s53
      %s68 = sphi 0, %s54
      %s74 = sphi 0, %s76
      %s77 = sphi 0, %s74
      %s78 = sphi 0, %s77
      %s94 = sphi 0, %s78
      %s100 = sphi 0, %s102
      %s103 = sphi 0, %s100
      %s104 = sphi 0, %s103
      %s120 = sphi 0, %s104
    $region4: #{tpu_custom_call.1} parent=1 // loop_header_branch
      %20 = sbr.rel (%p18) target = $region8
    $region5: #{tpu_custom_call.1} parent=1 // loop_body
      %s22 = ssub.s32 %s17, 1
      %s23 = ssub.s32 %s17, 2
      %s24 = sadd.s32 %s17, 1
      %s25 = ssub.s32 %s17, %s24
      %p26 = scmp.eq.s32.totalorder %s25, 0
      %s28 = sadd.s32 %s27, 1
      %s29 = scalar_select %p26, %s27, %s28
      %p32 = pneg %p26
      %p33 = scmp.eq.s32.totalorder %s17, 1
      %p34 = por %p32, %p33
      %p35 = scmp.ne.s32.totalorder %s27, %s30
      %p36 = scmp.eq.s32.totalorder %s17, 0
      %p37 = por %p35, %p36
      %p38 = scmp.ne.s32.totalorder %s27, %s30
      %p39 = scmp.eq.s32.totalorder %s22, 1
      %p40 = por %p38, %p39
      %p41 = scmp.ne.s32.totalorder %s30, %s31
      %p42 = scmp.eq.s32.totalorder %s22, 0
      %p43 = por %p41, %p42
      %p44 = scmp.ne.s32.totalorder %s30, %s31
      %p45 = scmp.eq.s32.totalorder %s23, 1
      %p46 = por %p44, %p45
      %p48 = scmp.ne.s32.totalorder %s31, %s47
      %p49 = scmp.eq.s32.totalorder %s23, 0
      %p50 = por %p48, %p49
      %s52 = sadd.s32 %s51, 1
      %p55 = scmp.eq.s32.totalorder %s17, 1
      %p56 = scmp.ne.s32.totalorder %s51, %s53
      %p57 = scmp.eq.s32.totalorder %s17, 0
      %p58 = por %p56, %p57
      %p59 = scmp.ne.s32.totalorder %s51, %s53
      %p60 = scmp.eq.s32.totalorder %s22, 1
      %p61 = por %p59, %p60
      %p62 = scmp.ne.s32.totalorder %s53, %s54
      %p63 = scmp.eq.s32.totalorder %s22, 0
      %p64 = por %p62, %p63
      %p65 = scmp.ne.s32.totalorder %s53, %s54
      %p66 = scmp.eq.s32.totalorder %s23, 1
      %p67 = por %p65, %p66
      %p69 = scmp.ne.s32.totalorder %s54, %s68
      %p70 = scmp.eq.s32.totalorder %s23, 0
      %p71 = por %p69, %p70
      %s72 = ssub.s32 %s17, %s24
      %p73 = scmp.eq.s32.totalorder %s72, 0
      %s75 = sadd.s32 %s74, 1
      %s76 = scalar_select %p73, %s74, %s75
      %p79 = pneg %p73
      %p80 = scmp.eq.s32.totalorder %s17, 1
      %p81 = por %p79, %p80
      %p82 = scmp.ne.s32.totalorder %s74, %s77
      %p83 = scmp.eq.s32.totalorder %s17, 0
      %p84 = por %p82, %p83
      %p85 = scmp.ne.s32.totalorder %s74, %s77
      %p86 = scmp.eq.s32.totalorder %s22, 1
      %p87 = por %p85, %p86
      %p88 = scmp.ne.s32.totalorder %s77, %s78
      %p89 = scmp.eq.s32.totalorder %s22, 0
      %p90 = por %p88, %p89
      %p91 = scmp.ne.s32.totalorder %s77, %s78
      %p92 = scmp.eq.s32.totalorder %s23, 1
      %p93 = por %p91, %p92
      %p95 = scmp.ne.s32.totalorder %s78, %s94
      %p96 = scmp.eq.s32.totalorder %s23, 0
      %p97 = por %p95, %p96
      %s98 = ssub.s32 %s17, %s24
      %p99 = scmp.eq.s32.totalorder %s98, 0
      %s101 = sadd.s32 %s100, 1
      %s102 = scalar_select %p99, %s100, %s101
      %p105 = pneg %p99
      %p106 = scmp.eq.s32.totalorder %s17, 1
      %p107 = por %p105, %p106
      %p108 = scmp.ne.s32.totalorder %s100, %s103
      %p109 = scmp.eq.s32.totalorder %s17, 0
      %p110 = por %p108, %p109
      %p111 = scmp.ne.s32.totalorder %s100, %s103
      %p112 = scmp.eq.s32.totalorder %s22, 1
      %p113 = por %p111, %p112
      %p114 = scmp.ne.s32.totalorder %s103, %s104
      %p115 = scmp.eq.s32.totalorder %s22, 0
      %p116 = por %p114, %p115
      %p117 = scmp.ne.s32.totalorder %s103, %s104
      %p118 = scmp.eq.s32.totalorder %s23, 1
      %p119 = por %p117, %p118
      %p121 = scmp.ne.s32.totalorder %s104, %s120
      %p122 = scmp.eq.s32.totalorder %s23, 0
      %p123 = por %p121, %p122
      %p124 = scmp.le.s32.totalorder 1, %s17
      %p125 = scmp.lt.s32.totalorder %s17, 3
      %p126 = pnand %p124, %p125
      %p127 = pneg %p126
      // Predicated region
      $region9: #{tpu_custom_call.1} parent=5 // pred_check
        _
      $region10: #{tpu_custom_call.1} parent=5 // pred_check_branch
        %129 = sbr.rel (%p126) target = $region12
      $region11: #{tpu_custom_call.1} parent=5 // pred_region
        %s130 = ssub.s32 %s17, 1
        // Predicated region
        $region13: #{tpu_custom_call.1} parent=11 // pred_check
          %p131 = pneg %p64
        $region14: #{tpu_custom_call.1} parent=11 // pred_check_branch
          %133 = sbr.rel (%p131) target = $region16
        $region15: #{tpu_custom_call.1} parent=11 // pred_region
          %s135 = ssub.s32 128, 128
          %136 = vsyncadd [#allocation6], %s135
          %s138 = sshll.u32 [#allocation5], 4
          %s139 = int_to_ptr.vmem [resolvable:$true] %s138
          %141 = dma.hbm_to_vmem [thread:$0]  %s1, 128, %s139, [#allocation6]
        $region16: #{tpu_custom_call.1} parent=11 // pred_fallthru
          _
      $region12: #{tpu_custom_call.1} parent=5 // pred_fallthru
        _
      %p142 = scmp.lt.s32.totalorder %s17, 2
      // Predicated region
      $region17: #{tpu_custom_call.1} parent=5 // pred_check
        %p143 = pneg %p142
      $region18: #{tpu_custom_call.1} parent=5 // pred_check_branch
        %145 = sbr.rel (%p143) target = $region20
      $region19: #{tpu_custom_call.1} parent=5 // pred_region
        // Predicated region
        $region21: #{tpu_custom_call.1} parent=19 // pred_check
          %p146 = pneg %p37
        $region22: #{tpu_custom_call.1} parent=19 // pred_check_branch
          %148 = sbr.rel (%p146) target = $region24
        $region23: #{tpu_custom_call.1} parent=19 // pred_region
          %s149 = sand.u32 %s27, 1
          %s150 = scalar_lea.sflag [#allocation3], %s149
          %s151 = sand.u32 %s27, 1
          %s152 = smul.addr %s151, 64
          %s153 = scalar_lea.vmem [#allocation2], %s152
          %s155 = ssub.s32 1024, 1024
          %156 = vsyncadd %s150, %s155
          %s157 = smul.addr %s17, 8
          %s158 = smul.addr %s157, 128
          %s159 = scalar_lea.hbm %s0, %s158
          %s160 = sshll.u32 %s153, 4
          %s161 = int_to_ptr.vmem [resolvable:$true] %s160
          %166 = dma.hbm_to_vmem [thread:$0]  %s159, 1024, %s161, %s150, 128, 128, 8
        $region24: #{tpu_custom_call.1} parent=19 // pred_fallthru
          _
      $region20: #{tpu_custom_call.1} parent=5 // pred_fallthru
        _
      %p167 = scmp.le.s32.totalorder 1, %s17
      %p168 = scmp.lt.s32.totalorder %s17, 3
      %p169 = pnand %p167, %p168
      %p170 = pneg %p169
      // Predicated region
      $region25: #{tpu_custom_call.1} parent=5 // pred_check
        _
      $region26: #{tpu_custom_call.1} parent=5 // pred_check_branch
        %172 = sbr.rel (%p169) target = $region28
      $region27: #{tpu_custom_call.1} parent=5 // pred_region
        %s173 = ssub.s32 %s17, 1
        %s174 = sand.u32 %s30, 1
        %s175 = scalar_lea.sflag [#allocation3], %s174
        %s176 = sand.u32 %s30, 1
        %s177 = smul.addr %s176, 64
        %s178 = scalar_lea.vmem [#allocation2], %s177
        // Predicated region
        $region29: #{tpu_custom_call.1} parent=27 // pred_check
          %p179 = pneg %p43
        $region30: #{tpu_custom_call.1} parent=27 // pred_check_branch
          %181 = sbr.rel (%p179) target = $region32
        $region31: #{tpu_custom_call.1} parent=27 // pred_region
          %182 = dma.done %s175, 1024
        $region32: #{tpu_custom_call.1} parent=27 // pred_fallthru
          _
        // Predicated region
        $region33: #{tpu_custom_call.1} parent=27 // pred_check
          %p183 = pneg %p64
        $region34: #{tpu_custom_call.1} parent=27 // pred_check_branch
          %185 = sbr.rel (%p183) target = $region36
        $region35: #{tpu_custom_call.1} parent=27 // pred_region
          %186 = dma.done [#allocation6], 128
        $region36: #{tpu_custom_call.1} parent=27 // pred_fallthru
          _
        %s187 = sand.u32 %s30, 1
        %s188 = scalar_lea.sflag [#allocation3], %s187
        %s189 = sand.u32 %s30, 1
        %s190 = smul.addr %s189, 64
        %s191 = scalar_lea.vmem [#allocation2], %s190
        %p192 = pneg %p43
        %p193 = pneg %p40
        %p194 = pneg %p64
        %p195 = pneg %p61
        %p196 = pneg %p90
        %p197 = pneg %p87
        %s198 = sand.u32 %s77, 1
        %s199 = scalar_lea.sflag [#allocation4], %s198
        %s200 = sand.u32 %s77, 1
        %s201 = smul.addr %s200, 16
        %s202 = scalar_lea.vmem [#allocation7], %s201
        %p203 = pneg %p116
        %p204 = pneg %p113
        %p205 = scmp.lt.s32.totalorder %s22, 1
        %s206 = scalar_select %p205, %s22, 1
        %s207 = smul.addr %s206, 8
        %s208 = scalar_lea.vmem %s3, %s207
        %p209 = scmp.lt.s32.totalorder %s22, 1
        %s210 = scalar_select %p209, %s22, 1
        %s211 = smul.addr %s210, 8
        %s212 = scalar_lea.vmem %s3, %s211
        %v213 = vld [vmem:[%s178] sm:$0xff]
        %v214 = vld [vmem:[%s178 + $0x8] sm:$0xff]
        %v215 = vld [vmem:[%s178 + $0x10] sm:$0xff]
        %v216 = vld [vmem:[%s178 + $0x18] sm:$0xff]
        %v217 = vld [vmem:[%s178 + $0x20] sm:$0xff]
        %v218 = vld [vmem:[%s178 + $0x28] sm:$0xff]
        %v219 = vld [vmem:[%s178 + $0x30] sm:$0xff]
        %v220 = vld [vmem:[%s178 + $0x38] sm:$0xff]
        %v221 = vld [vmem:[#allocation5] sm:$0xff]
        %v222 = vcombine.low %v213, %v217
        %v223 = vcombine.high %v213, %v217
        %v225 = vunpack.c.l.s4 1983009808
        %v226 = vunpack.c.0.s8 %v225
        %v227 = vlaneseq
        %v228 = vshrl.u32 %v227, 7
        %v229 = vsub.s32 %v226, %v228
        %v230 = vrot.slane %v222, %v229
        %v232 = vunpack.c.l.s4 1983009808
        %v233 = vunpack.c.0.s8 %v232
        %v234 = vlaneseq
        %v235 = vshrl.u32 %v234, 7
        %v236 = vsub.s32 %v233, %v235
        %v237 = vrot.slane %v223, %v236
        %v238 = vcombine.low %v215, %v219
        %v239 = vcombine.high %v215, %v219
        %v241 = vunpack.c.l.s4 1983009808
        %v242 = vunpack.c.0.s8 %v241
        %v243 = vlaneseq
        %v244 = vshrl.u32 %v243, 7
        %v245 = vsub.s32 %v242, %v244
        %v246 = vrot.slane %v238, %v245
        %v248 = vunpack.c.l.s4 1983009808
        %v249 = vunpack.c.0.s8 %v248
        %v250 = vlaneseq
        %v251 = vshrl.u32 %v250, 7
        %v252 = vsub.s32 %v249, %v251
        %v253 = vrot.slane %v239, %v252
        %v254 = vcombine.low %v230, %v246
        %v255 = vcombine.high %v230, %v246
        %v257 = vunpack.c.l.s4 1934713408
        %v258 = vunpack.c.0.s8 %v257
        %v259 = vlaneseq
        %v260 = vshrl.u32 %v259, 7
        %v261 = vsub.s32 %v258, %v260
        %v262 = vrot.slane %v254, %v261
        %v264 = vunpack.c.l.s4 1934713408
        %v265 = vunpack.c.0.s8 %v264
        %v266 = vlaneseq
        %v267 = vshrl.u32 %v266, 7
        %v268 = vsub.s32 %v265, %v267
        %v269 = vrot.slane %v255, %v268
        %v270 = vcombine.low %v237, %v253
        %v271 = vcombine.high %v237, %v253
        %v273 = vunpack.c.l.s4 1934713408
        %v274 = vunpack.c.0.s8 %v273
        %v275 = vlaneseq
        %v276 = vshrl.u32 %v275, 7
        %v277 = vsub.s32 %v274, %v276
        %v278 = vrot.slane %v270, %v277
        %v280 = vunpack.c.l.s4 1934713408
        %v281 = vunpack.c.0.s8 %v280
        %v282 = vlaneseq
        %v283 = vshrl.u32 %v282, 7
        %v284 = vsub.s32 %v281, %v283
        %v285 = vrot.slane %v271, %v284
        %v286 = vcombine.high %v262, 0.0
        %v287 = vcombine.high %v269, 0.0
        %v288 = vcombine.high %v278, 0.0
        %v289 = vcombine.high %v285, 0.0
        %v290 = vcombine.low %v214, %v218
        %v291 = vcombine.high %v214, %v218
        %v293 = vunpack.c.l.s4 1983009808
        %v294 = vunpack.c.0.s8 %v293
        %v295 = vlaneseq
        %v296 = vshrl.u32 %v295, 7
        %v297 = vsub.s32 %v294, %v296
        %v298 = vrot.slane %v290, %v297
        %v300 = vunpack.c.l.s4 1983009808
        %v301 = vunpack.c.0.s8 %v300
        %v302 = vlaneseq
        %v303 = vshrl.u32 %v302, 7
        %v304 = vsub.s32 %v301, %v303
        %v305 = vrot.slane %v291, %v304
        %v306 = vcombine.low %v216, %v220
        %v307 = vcombine.high %v216, %v220
        %v309 = vunpack.c.l.s4 1983009808
        %v310 = vunpack.c.0.s8 %v309
        %v311 = vlaneseq
        %v312 = vshrl.u32 %v311, 7
        %v313 = vsub.s32 %v310, %v312
        %v314 = vrot.slane %v306, %v313
        %v316 = vunpack.c.l.s4 1983009808
        %v317 = vunpack.c.0.s8 %v316
        %v318 = vlaneseq
        %v319 = vshrl.u32 %v318, 7
        %v320 = vsub.s32 %v317, %v319
        %v321 = vrot.slane %v307, %v320
        %v322 = vcombine.low %v298, %v314
        %v323 = vcombine.high %v298, %v314
        %v325 = vunpack.c.l.s4 1934713408
        %v326 = vunpack.c.0.s8 %v325
        %v327 = vlaneseq
        %v328 = vshrl.u32 %v327, 7
        %v329 = vsub.s32 %v326, %v328
        %v330 = vrot.slane %v322, %v329
        %v332 = vunpack.c.l.s4 1934713408
        %v333 = vunpack.c.0.s8 %v332
        %v334 = vlaneseq
        %v335 = vshrl.u32 %v334, 7
        %v336 = vsub.s32 %v333, %v335
        %v337 = vrot.slane %v323, %v336
        %v338 = vcombine.low %v305, %v321
        %v340 = vunpack.c.l.s4 1934713408
        %v341 = vunpack.c.0.s8 %v340
        %v342 = vlaneseq
        %v343 = vshrl.u32 %v342, 7
        %v344 = vsub.s32 %v341, %v343
        %v345 = vrot.slane %v338, %v344
        %v346 = vcombine.high %v330, 0.0
        %v347 = vcombine.high %v337, 0.0
        %v348 = vcombine.high %v345, 0.0
        %350 = vrot.lane.b32.xlu0 %v286, 14
        %v351 = vpop.permute.xlu0 %350
        %354 = vrot.lane.b32.xlu0 %v269, 28
        %v355 = vpop.permute.xlu0 %354
        %358 = vrot.lane.b32.xlu0 %v287, 42
        %v359 = vpop.permute.xlu0 %358
        %362 = vrot.lane.b32.xlu0 %v278, 56
        %v363 = vpop.permute.xlu0 %362
        %366 = vrot.lane.b32.xlu0 %v288, 70
        %v367 = vpop.permute.xlu0 %366
        %370 = vrot.lane.b32.xlu0 %v285, 84
        %v371 = vpop.permute.xlu0 %370
        %374 = vrot.lane.b32.xlu0 %v289, 98
        %v375 = vpop.permute.xlu0 %374
        %378 = vrot.lane.b32.xlu0 %v330, 112
        %v379 = vpop.permute.xlu0 %378
        %382 = vrot.lane.b32.xlu0 %v346, 126
        %v383 = vpop.permute.xlu0 %382
        %386 = vrot.lane.b32.xlu0 %v337, 12
        %v387 = vpop.permute.xlu0 %386
        %390 = vrot.lane.b32.xlu0 %v347, 26
        %v391 = vpop.permute.xlu0 %390
        %394 = vrot.lane.b32.xlu0 %v345, 40
        %v395 = vpop.permute.xlu0 %394
        %398 = vrot.lane.b32.xlu0 %v348, 54
        %v399 = vpop.permute.xlu0 %398
        %vm401 = vcmask 113664
        %v402 = vsel %vm401, %v262, %v351
        %vm403 = vcmask 228352
        %v404 = vsel %vm403, %v402, %v355
        %vm405 = vcmask 343040
        %v406 = vsel %vm405, %v404, %v359
        %vm407 = vcmask 457728
        %v408 = vsel %vm407, %v406, %v363
        %vm409 = vcmask 572416
        %v410 = vsel %vm409, %v408, %v367
        %vm411 = vcmask 687104
        %v412 = vsel %vm411, %v410, %v371
        %vm413 = vcmask 801792
        %v414 = vsel %vm413, %v412, %v375
        %vm415 = vcmask 916480
        %v416 = vsel %vm415, %v414, %v379
        %vm417 = vcmask 1031168
        %v418 = vsel %vm417, %v416, %v383
        %vm419 = vcmask 97280
        %v420 = vsel %vm419, %v383, %v387
        %vm421 = vcmask 211968
        %v422 = vsel %vm421, %v420, %v391
        %vm423 = vcmask 326656
        %v424 = vsel %vm423, %v422, %v395
        %vm425 = vcmask 441344
        %v426 = vsel %vm425, %v424, %v399
        %435 = vrot.lane.b32.xlu0 %v213, 127
        %v436 = vpop.permute.xlu0 %435
        %437 = vrot.lane.b32.xlu0 %v214, 127
        %v438 = vpop.permute.xlu0 %437
        %439 = vrot.lane.b32.xlu0 %v215, 127
        %v440 = vpop.permute.xlu0 %439
        %441 = vrot.lane.b32.xlu0 %v216, 127
        %v442 = vpop.permute.xlu0 %441
        %443 = vrot.lane.b32.xlu0 %v217, 127
        %v444 = vpop.permute.xlu0 %443
        %445 = vrot.lane.b32.xlu0 %v218, 127
        %v446 = vpop.permute.xlu0 %445
        %447 = vrot.lane.b32.xlu0 %v219, 127
        %v448 = vpop.permute.xlu0 %447
        %449 = vrot.lane.b32.xlu0 %v220, 127
        %v450 = vpop.permute.xlu0 %449
        %v459 = vcombine.low %v436, %v444
        %v460 = vcombine.high %v436, %v444
        %v462 = vunpack.c.l.s4 1983009808
        %v463 = vunpack.c.0.s8 %v462
        %v464 = vlaneseq
        %v465 = vshrl.u32 %v464, 7
        %v466 = vsub.s32 %v463, %v465
        %v467 = vrot.slane %v459, %v466
        %v469 = vunpack.c.l.s4 1983009808
        %v470 = vunpack.c.0.s8 %v469
        %v471 = vlaneseq
        %v472 = vshrl.u32 %v471, 7
        %v473 = vsub.s32 %v470, %v472
        %v474 = vrot.slane %v460, %v473
        %v475 = vcombine.low %v440, %v448
        %v476 = vcombine.high %v440, %v448
        %v478 = vunpack.c.l.s4 1983009808
        %v479 = vunpack.c.0.s8 %v478
        %v480 = vlaneseq
        %v481 = vshrl.u32 %v480, 7
        %v482 = vsub.s32 %v479, %v481
        %v483 = vrot.slane %v475, %v482
        %v485 = vunpack.c.l.s4 1983009808
        %v486 = vunpack.c.0.s8 %v485
        %v487 = vlaneseq
        %v488 = vshrl.u32 %v487, 7
        %v489 = vsub.s32 %v486, %v488
        %v490 = vrot.slane %v476, %v489
        %v491 = vcombine.low %v467, %v483
        %v492 = vcombine.high %v467, %v483
        %v494 = vunpack.c.l.s4 1934713408
        %v495 = vunpack.c.0.s8 %v494
        %v496 = vlaneseq
        %v497 = vshrl.u32 %v496, 7
        %v498 = vsub.s32 %v495, %v497
        %v499 = vrot.slane %v491, %v498
        %v501 = vunpack.c.l.s4 1934713408
        %v502 = vunpack.c.0.s8 %v501
        %v503 = vlaneseq
        %v504 = vshrl.u32 %v503, 7
        %v505 = vsub.s32 %v502, %v504
        %v506 = vrot.slane %v492, %v505
        %v507 = vcombine.low %v474, %v490
        %v508 = vcombine.high %v474, %v490
        %v510 = vunpack.c.l.s4 1934713408
        %v511 = vunpack.c.0.s8 %v510
        %v512 = vlaneseq
        %v513 = vshrl.u32 %v512, 7
        %v514 = vsub.s32 %v511, %v513
        %v515 = vrot.slane %v507, %v514
        %v517 = vunpack.c.l.s4 1934713408
        %v518 = vunpack.c.0.s8 %v517
        %v519 = vlaneseq
        %v520 = vshrl.u32 %v519, 7
        %v521 = vsub.s32 %v518, %v520
        %v522 = vrot.slane %v508, %v521
        %v523 = vcombine.high %v499, 0.0
        %v524 = vcombine.high %v506, 0.0
        %v525 = vcombine.high %v515, 0.0
        %v526 = vcombine.high %v522, 0.0
        %v527 = vcombine.low %v438, %v446
        %v528 = vcombine.high %v438, %v446
        %v530 = vunpack.c.l.s4 1983009808
        %v531 = vunpack.c.0.s8 %v530
        %v532 = vlaneseq
        %v533 = vshrl.u32 %v532, 7
        %v534 = vsub.s32 %v531, %v533
        %v535 = vrot.slane %v527, %v534
        %v537 = vunpack.c.l.s4 1983009808
        %v538 = vunpack.c.0.s8 %v537
        %v539 = vlaneseq
        %v540 = vshrl.u32 %v539, 7
        %v541 = vsub.s32 %v538, %v540
        %v542 = vrot.slane %v528, %v541
        %v543 = vcombine.low %v442, %v450
        %v544 = vcombine.high %v442, %v450
        %v546 = vunpack.c.l.s4 1983009808
        %v547 = vunpack.c.0.s8 %v546
        %v548 = vlaneseq
        %v549 = vshrl.u32 %v548, 7
        %v550 = vsub.s32 %v547, %v549
        %v551 = vrot.slane %v543, %v550
        %v553 = vunpack.c.l.s4 1983009808
        %v554 = vunpack.c.0.s8 %v553
        %v555 = vlaneseq
        %v556 = vshrl.u32 %v555, 7
        %v557 = vsub.s32 %v554, %v556
        %v558 = vrot.slane %v544, %v557
        %v559 = vcombine.low %v535, %v551
        %v560 = vcombine.high %v535, %v551
        %v562 = vunpack.c.l.s4 1934713408
        %v563 = vunpack.c.0.s8 %v562
        %v564 = vlaneseq
        %v565 = vshrl.u32 %v564, 7
        %v566 = vsub.s32 %v563, %v565
        %v567 = vrot.slane %v559, %v566
        %v569 = vunpack.c.l.s4 1934713408
        %v570 = vunpack.c.0.s8 %v569
        %v571 = vlaneseq
        %v572 = vshrl.u32 %v571, 7
        %v573 = vsub.s32 %v570, %v572
        %v574 = vrot.slane %v560, %v573
        %v575 = vcombine.low %v542, %v558
        %v577 = vunpack.c.l.s4 1934713408
        %v578 = vunpack.c.0.s8 %v577
        %v579 = vlaneseq
        %v580 = vshrl.u32 %v579, 7
        %v581 = vsub.s32 %v578, %v580
        %v582 = vrot.slane %v575, %v581
        %v583 = vcombine.high %v567, 0.0
        %v584 = vcombine.high %v574, 0.0
        %v585 = vcombine.high %v582, 0.0
        %587 = vrot.lane.b32.xlu0 %v523, 14
        %v588 = vpop.permute.xlu0 %587
        %591 = vrot.lane.b32.xlu0 %v506, 28
        %v592 = vpop.permute.xlu0 %591
        %595 = vrot.lane.b32.xlu0 %v524, 42
        %v596 = vpop.permute.xlu0 %595
        %599 = vrot.lane.b32.xlu0 %v515, 56
        %v600 = vpop.permute.xlu0 %599
        %603 = vrot.lane.b32.xlu0 %v525, 70
        %v604 = vpop.permute.xlu0 %603
        %607 = vrot.lane.b32.xlu0 %v522, 84
        %v608 = vpop.permute.xlu0 %607
        %611 = vrot.lane.b32.xlu0 %v526, 98
        %v612 = vpop.permute.xlu0 %611
        %615 = vrot.lane.b32.xlu0 %v567, 112
        %v616 = vpop.permute.xlu0 %615
        %619 = vrot.lane.b32.xlu0 %v583, 126
        %v620 = vpop.permute.xlu0 %619
        %623 = vrot.lane.b32.xlu0 %v574, 12
        %v624 = vpop.permute.xlu0 %623
        %627 = vrot.lane.b32.xlu0 %v584, 26
        %v628 = vpop.permute.xlu0 %627
        %631 = vrot.lane.b32.xlu0 %v582, 40
        %v632 = vpop.permute.xlu0 %631
        %635 = vrot.lane.b32.xlu0 %v585, 54
        %v636 = vpop.permute.xlu0 %635
        %v638 = vsel %vm401, %v499, %v588
        %v639 = vsel %vm403, %v638, %v592
        %v640 = vsel %vm405, %v639, %v596
        %v641 = vsel %vm407, %v640, %v600
        %v642 = vsel %vm409, %v641, %v604
        %v643 = vsel %vm411, %v642, %v608
        %v644 = vsel %vm413, %v643, %v612
        %v645 = vsel %vm415, %v644, %v616
        %v646 = vsel %vm417, %v645, %v620
        %v647 = vsel %vm419, %v620, %v624
        %v648 = vsel %vm421, %v647, %v628
        %v649 = vsel %vm423, %v648, %v632
        %v650 = vsel %vm425, %v649, %v636
        %651 = vrot.lane.b32.xlu0 %v213, 126
        %v652 = vpop.permute.xlu0 %651
        %653 = vrot.lane.b32.xlu0 %v214, 126
        %v654 = vpop.permute.xlu0 %653
        %655 = vrot.lane.b32.xlu0 %v215, 126
        %v656 = vpop.permute.xlu0 %655
        %657 = vrot.lane.b32.xlu0 %v216, 126
        %v658 = vpop.permute.xlu0 %657
        %659 = vrot.lane.b32.xlu0 %v217, 126
        %v660 = vpop.permute.xlu0 %659
        %661 = vrot.lane.b32.xlu0 %v218, 126
        %v662 = vpop.permute.xlu0 %661
        %663 = vrot.lane.b32.xlu0 %v219, 126
        %v664 = vpop.permute.xlu0 %663
        %665 = vrot.lane.b32.xlu0 %v220, 126
        %v666 = vpop.permute.xlu0 %665
        %v675 = vcombine.low %v652, %v660
        %v676 = vcombine.high %v652, %v660
        %v678 = vunpack.c.l.s4 1983009808
        %v679 = vunpack.c.0.s8 %v678
        %v680 = vlaneseq
        %v681 = vshrl.u32 %v680, 7
        %v682 = vsub.s32 %v679, %v681
        %v683 = vrot.slane %v675, %v682
        %v685 = vunpack.c.l.s4 1983009808
        %v686 = vunpack.c.0.s8 %v685
        %v687 = vlaneseq
        %v688 = vshrl.u32 %v687, 7
        %v689 = vsub.s32 %v686, %v688
        %v690 = vrot.slane %v676, %v689
        %v691 = vcombine.low %v656, %v664
        %v692 = vcombine.high %v656, %v664
        %v694 = vunpack.c.l.s4 1983009808
        %v695 = vunpack.c.0.s8 %v694
        %v696 = vlaneseq
        %v697 = vshrl.u32 %v696, 7
        %v698 = vsub.s32 %v695, %v697
        %v699 = vrot.slane %v691, %v698
        %v701 = vunpack.c.l.s4 1983009808
        %v702 = vunpack.c.0.s8 %v701
        %v703 = vlaneseq
        %v704 = vshrl.u32 %v703, 7
        %v705 = vsub.s32 %v702, %v704
        %v706 = vrot.slane %v692, %v705
        %v707 = vcombine.low %v683, %v699
        %v708 = vcombine.high %v683, %v699
        %v710 = vunpack.c.l.s4 1934713408
        %v711 = vunpack.c.0.s8 %v710
        %v712 = vlaneseq
        %v713 = vshrl.u32 %v712, 7
        %v714 = vsub.s32 %v711, %v713
        %v715 = vrot.slane %v707, %v714
        %v717 = vunpack.c.l.s4 1934713408
        %v718 = vunpack.c.0.s8 %v717
        %v719 = vlaneseq
        %v720 = vshrl.u32 %v719, 7
        %v721 = vsub.s32 %v718, %v720
        %v722 = vrot.slane %v708, %v721
        %v723 = vcombine.low %v690, %v706
        %v724 = vcombine.high %v690, %v706
        %v726 = vunpack.c.l.s4 1934713408
        %v727 = vunpack.c.0.s8 %v726
        %v728 = vlaneseq
        %v729 = vshrl.u32 %v728, 7
        %v730 = vsub.s32 %v727, %v729
        %v731 = vrot.slane %v723, %v730
        %v733 = vunpack.c.l.s4 1934713408
        %v734 = vunpack.c.0.s8 %v733
        %v735 = vlaneseq
        %v736 = vshrl.u32 %v735, 7
        %v737 = vsub.s32 %v734, %v736
        %v738 = vrot.slane %v724, %v737
        %v739 = vcombine.high %v715, 0.0
        %v740 = vcombine.high %v722, 0.0
        %v741 = vcombine.high %v731, 0.0
        %v742 = vcombine.high %v738, 0.0
        %v743 = vcombine.low %v654, %v662
        %v744 = vcombine.high %v654, %v662
        %v746 = vunpack.c.l.s4 1983009808
        %v747 = vunpack.c.0.s8 %v746
        %v748 = vlaneseq
        %v749 = vshrl.u32 %v748, 7
        %v750 = vsub.s32 %v747, %v749
        %v751 = vrot.slane %v743, %v750
        %v753 = vunpack.c.l.s4 1983009808
        %v754 = vunpack.c.0.s8 %v753
        %v755 = vlaneseq
        %v756 = vshrl.u32 %v755, 7
        %v757 = vsub.s32 %v754, %v756
        %v758 = vrot.slane %v744, %v757
        %v759 = vcombine.low %v658, %v666
        %v760 = vcombine.high %v658, %v666
        %v762 = vunpack.c.l.s4 1983009808
        %v763 = vunpack.c.0.s8 %v762
        %v764 = vlaneseq
        %v765 = vshrl.u32 %v764, 7
        %v766 = vsub.s32 %v763, %v765
        %v767 = vrot.slane %v759, %v766
        %v769 = vunpack.c.l.s4 1983009808
        %v770 = vunpack.c.0.s8 %v769
        %v771 = vlaneseq
        %v772 = vshrl.u32 %v771, 7
        %v773 = vsub.s32 %v770, %v772
        %v774 = vrot.slane %v760, %v773
        %v775 = vcombine.low %v751, %v767
        %v776 = vcombine.high %v751, %v767
        %v778 = vunpack.c.l.s4 1934713408
        %v779 = vunpack.c.0.s8 %v778
        %v780 = vlaneseq
        %v781 = vshrl.u32 %v780, 7
        %v782 = vsub.s32 %v779, %v781
        %v783 = vrot.slane %v775, %v782
        %v785 = vunpack.c.l.s4 1934713408
        %v786 = vunpack.c.0.s8 %v785
        %v787 = vlaneseq
        %v788 = vshrl.u32 %v787, 7
        %v789 = vsub.s32 %v786, %v788
        %v790 = vrot.slane %v776, %v789
        %v791 = vcombine.low %v758, %v774
        %v793 = vunpack.c.l.s4 1934713408
        %v794 = vunpack.c.0.s8 %v793
        %v795 = vlaneseq
        %v796 = vshrl.u32 %v795, 7
        %v797 = vsub.s32 %v794, %v796
        %v798 = vrot.slane %v791, %v797
        %v799 = vcombine.high %v783, 0.0
        %v800 = vcombine.high %v790, 0.0
        %v801 = vcombine.high %v798, 0.0
        %803 = vrot.lane.b32.xlu0 %v739, 14
        %v804 = vpop.permute.xlu0 %803
        %807 = vrot.lane.b32.xlu0 %v722, 28
        %v808 = vpop.permute.xlu0 %807
        %811 = vrot.lane.b32.xlu0 %v740, 42
        %v812 = vpop.permute.xlu0 %811
        %815 = vrot.lane.b32.xlu0 %v731, 56
        %v816 = vpop.permute.xlu0 %815
        %819 = vrot.lane.b32.xlu0 %v741, 70
        %v820 = vpop.permute.xlu0 %819
        %823 = vrot.lane.b32.xlu0 %v738, 84
        %v824 = vpop.permute.xlu0 %823
        %827 = vrot.lane.b32.xlu0 %v742, 98
        %v828 = vpop.permute.xlu0 %827
        %831 = vrot.lane.b32.xlu0 %v783, 112
        %v832 = vpop.permute.xlu0 %831
        %835 = vrot.lane.b32.xlu0 %v799, 126
        %v836 = vpop.permute.xlu0 %835
        %839 = vrot.lane.b32.xlu0 %v790, 12
        %v840 = vpop.permute.xlu0 %839
        %843 = vrot.lane.b32.xlu0 %v800, 26
        %v844 = vpop.permute.xlu0 %843
        %847 = vrot.lane.b32.xlu0 %v798, 40
        %v848 = vpop.permute.xlu0 %847
        %851 = vrot.lane.b32.xlu0 %v801, 54
        %v852 = vpop.permute.xlu0 %851
        %v854 = vsel %vm401, %v715, %v804
        %v855 = vsel %vm403, %v854, %v808
        %v856 = vsel %vm405, %v855, %v812
        %v857 = vsel %vm407, %v856, %v816
        %v858 = vsel %vm409, %v857, %v820
        %v859 = vsel %vm411, %v858, %v824
        %v860 = vsel %vm413, %v859, %v828
        %v861 = vsel %vm415, %v860, %v832
        %v862 = vsel %vm417, %v861, %v836
        %v863 = vsel %vm419, %v836, %v840
        %v864 = vsel %vm421, %v863, %v844
        %v865 = vsel %vm423, %v864, %v848
        %v866 = vsel %vm425, %v865, %v852
        %vm867 = vcmask 1046528
        %v868 = vrot.slane %v213, 1
        %v869 = vrot.slane %v214, 1
        %v870 = vsel %vm867, %v868, %v869
        %v871 = vrot.slane %v215, 1
        %v872 = vrot.slane %v216, 1
        %v873 = vsel %vm867, %v871, %v872
        %v874 = vrot.slane %v217, 1
        %v875 = vrot.slane %v218, 1
        %v876 = vsel %vm867, %v874, %v875
        %v877 = vrot.slane %v219, 1
        %v878 = vrot.slane %v220, 1
        %v879 = vsel %vm867, %v877, %v878
        %v888 = vcombine.low %v870, %v876
        %v889 = vcombine.high %v870, %v876
        %v891 = vunpack.c.l.s4 1983009808
        %v892 = vunpack.c.0.s8 %v891
        %v893 = vlaneseq
        %v894 = vshrl.u32 %v893, 7
        %v895 = vsub.s32 %v892, %v894
        %v896 = vrot.slane %v888, %v895
        %v898 = vunpack.c.l.s4 1983009808
        %v899 = vunpack.c.0.s8 %v898
        %v900 = vlaneseq
        %v901 = vshrl.u32 %v900, 7
        %v902 = vsub.s32 %v899, %v901
        %v903 = vrot.slane %v889, %v902
        %v904 = vcombine.low %v873, %v879
        %v905 = vcombine.high %v873, %v879
        %v907 = vunpack.c.l.s4 1983009808
        %v908 = vunpack.c.0.s8 %v907
        %v909 = vlaneseq
        %v910 = vshrl.u32 %v909, 7
        %v911 = vsub.s32 %v908, %v910
        %v912 = vrot.slane %v904, %v911
        %v914 = vunpack.c.l.s4 1983009808
        %v915 = vunpack.c.0.s8 %v914
        %v916 = vlaneseq
        %v917 = vshrl.u32 %v916, 7
        %v918 = vsub.s32 %v915, %v917
        %v919 = vrot.slane %v905, %v918
        %v920 = vcombine.low %v896, %v912
        %v921 = vcombine.high %v896, %v912
        %v923 = vunpack.c.l.s4 1934713408
        %v924 = vunpack.c.0.s8 %v923
        %v925 = vlaneseq
        %v926 = vshrl.u32 %v925, 7
        %v927 = vsub.s32 %v924, %v926
        %v928 = vrot.slane %v920, %v927
        %v930 = vunpack.c.l.s4 1934713408
        %v931 = vunpack.c.0.s8 %v930
        %v932 = vlaneseq
        %v933 = vshrl.u32 %v932, 7
        %v934 = vsub.s32 %v931, %v933
        %v935 = vrot.slane %v921, %v934
        %v936 = vcombine.low %v903, %v919
        %v937 = vcombine.high %v903, %v919
        %v939 = vunpack.c.l.s4 1934713408
        %v940 = vunpack.c.0.s8 %v939
        %v941 = vlaneseq
        %v942 = vshrl.u32 %v941, 7
        %v943 = vsub.s32 %v940, %v942
        %v944 = vrot.slane %v936, %v943
        %v946 = vunpack.c.l.s4 1934713408
        %v947 = vunpack.c.0.s8 %v946
        %v948 = vlaneseq
        %v949 = vshrl.u32 %v948, 7
        %v950 = vsub.s32 %v947, %v949
        %v951 = vrot.slane %v937, %v950
        %v952 = vcombine.high %v928, 0.0
        %v953 = vcombine.high %v935, 0.0
        %v954 = vcombine.high %v944, 0.0
        %v955 = vcombine.high %v951, 0.0
        %v956 = vcombine.low %v869, %v875
        %v957 = vcombine.high %v869, %v875
        %v959 = vunpack.c.l.s4 1983009808
        %v960 = vunpack.c.0.s8 %v959
        %v961 = vlaneseq
        %v962 = vshrl.u32 %v961, 7
        %v963 = vsub.s32 %v960, %v962
        %v964 = vrot.slane %v956, %v963
        %v966 = vunpack.c.l.s4 1983009808
        %v967 = vunpack.c.0.s8 %v966
        %v968 = vlaneseq
        %v969 = vshrl.u32 %v968, 7
        %v970 = vsub.s32 %v967, %v969
        %v971 = vrot.slane %v957, %v970
        %v972 = vcombine.low %v872, %v878
        %v973 = vcombine.high %v872, %v878
        %v975 = vunpack.c.l.s4 1983009808
        %v976 = vunpack.c.0.s8 %v975
        %v977 = vlaneseq
        %v978 = vshrl.u32 %v977, 7
        %v979 = vsub.s32 %v976, %v978
        %v980 = vrot.slane %v972, %v979
        %v982 = vunpack.c.l.s4 1983009808
        %v983 = vunpack.c.0.s8 %v982
        %v984 = vlaneseq
        %v985 = vshrl.u32 %v984, 7
        %v986 = vsub.s32 %v983, %v985
        %v987 = vrot.slane %v973, %v986
        %v988 = vcombine.low %v964, %v980
        %v989 = vcombine.high %v964, %v980
        %v991 = vunpack.c.l.s4 1934713408
        %v992 = vunpack.c.0.s8 %v991
        %v993 = vlaneseq
        %v994 = vshrl.u32 %v993, 7
        %v995 = vsub.s32 %v992, %v994
        %v996 = vrot.slane %v988, %v995
        %v998 = vunpack.c.l.s4 1934713408
        %v999 = vunpack.c.0.s8 %v998
        %v1000 = vlaneseq
        %v1001 = vshrl.u32 %v1000, 7
        %v1002 = vsub.s32 %v999, %v1001
        %v1003 = vrot.slane %v989, %v1002
        %v1004 = vcombine.low %v971, %v987
        %v1006 = vunpack.c.l.s4 1934713408
        %v1007 = vunpack.c.0.s8 %v1006
        %v1008 = vlaneseq
        %v1009 = vshrl.u32 %v1008, 7
        %v1010 = vsub.s32 %v1007, %v1009
        %v1011 = vrot.slane %v1004, %v1010
        %v1012 = vcombine.high %v996, 0.0
        %v1013 = vcombine.high %v1003, 0.0
        %v1014 = vcombine.high %v1011, 0.0
        %1016 = vrot.lane.b32.xlu0 %v952, 14
        %v1017 = vpop.permute.xlu0 %1016
        %1020 = vrot.lane.b32.xlu0 %v935, 28
        %v1021 = vpop.permute.xlu0 %1020
        %1024 = vrot.lane.b32.xlu0 %v953, 42
        %v1025 = vpop.permute.xlu0 %1024
        %1028 = vrot.lane.b32.xlu0 %v944, 56
        %v1029 = vpop.permute.xlu0 %1028
        %1032 = vrot.lane.b32.xlu0 %v954, 70
        %v1033 = vpop.permute.xlu0 %1032
        %1036 = vrot.lane.b32.xlu0 %v951, 84
        %v1037 = vpop.permute.xlu0 %1036
        %1040 = vrot.lane.b32.xlu0 %v955, 98
        %v1041 = vpop.permute.xlu0 %1040
        %1044 = vrot.lane.b32.xlu0 %v996, 112
        %v1045 = vpop.permute.xlu0 %1044
        %1048 = vrot.lane.b32.xlu0 %v1012, 126
        %v1049 = vpop.permute.xlu0 %1048
        %1052 = vrot.lane.b32.xlu0 %v1003, 12
        %v1053 = vpop.permute.xlu0 %1052
        %1056 = vrot.lane.b32.xlu0 %v1013, 26
        %v1057 = vpop.permute.xlu0 %1056
        %1060 = vrot.lane.b32.xlu0 %v1011, 40
        %v1061 = vpop.permute.xlu0 %1060
        %1064 = vrot.lane.b32.xlu0 %v1014, 54
        %v1065 = vpop.permute.xlu0 %1064
        %v1067 = vsel %vm401, %v928, %v1017
        %v1068 = vsel %vm403, %v1067, %v1021
        %v1069 = vsel %vm405, %v1068, %v1025
        %v1070 = vsel %vm407, %v1069, %v1029
        %v1071 = vsel %vm409, %v1070, %v1033
        %v1072 = vsel %vm411, %v1071, %v1037
        %v1073 = vsel %vm413, %v1072, %v1041
        %v1074 = vsel %vm415, %v1073, %v1045
        %v1075 = vsel %vm417, %v1074, %v1049
        %v1076 = vsel %vm419, %v1049, %v1053
        %v1077 = vsel %vm421, %v1076, %v1057
        %v1078 = vsel %vm423, %v1077, %v1061
        %v1079 = vsel %vm425, %v1078, %v1065
        %1080 = vrot.lane.b32.xlu0 %v870, 127
        %v1081 = vpop.permute.xlu0 %1080
        %1082 = vrot.lane.b32.xlu0 %v869, 127
        %v1083 = vpop.permute.xlu0 %1082
        %1084 = vrot.lane.b32.xlu0 %v873, 127
        %v1085 = vpop.permute.xlu0 %1084
        %1086 = vrot.lane.b32.xlu0 %v872, 127
        %v1087 = vpop.permute.xlu0 %1086
        %1088 = vrot.lane.b32.xlu0 %v876, 127
        %v1089 = vpop.permute.xlu0 %1088
        %1090 = vrot.lane.b32.xlu0 %v875, 127
        %v1091 = vpop.permute.xlu0 %1090
        %1092 = vrot.lane.b32.xlu0 %v879, 127
        %v1093 = vpop.permute.xlu0 %1092
        %1094 = vrot.lane.b32.xlu0 %v878, 127
        %v1095 = vpop.permute.xlu0 %1094
        %v1104 = vcombine.low %v1081, %v1089
        %v1105 = vcombine.high %v1081, %v1089
        %v1107 = vunpack.c.l.s4 1983009808
        %v1108 = vunpack.c.0.s8 %v1107
        %v1109 = vlaneseq
        %v1110 = vshrl.u32 %v1109, 7
        %v1111 = vsub.s32 %v1108, %v1110
        %v1112 = vrot.slane %v1104, %v1111
        %v1114 = vunpack.c.l.s4 1983009808
        %v1115 = vunpack.c.0.s8 %v1114
        %v1116 = vlaneseq
        %v1117 = vshrl.u32 %v1116, 7
        %v1118 = vsub.s32 %v1115, %v1117
        %v1119 = vrot.slane %v1105, %v1118
        %v1120 = vcombine.low %v1085, %v1093
        %v1121 = vcombine.high %v1085, %v1093
        %v1123 = vunpack.c.l.s4 1983009808
        %v1124 = vunpack.c.0.s8 %v1123
        %v1125 = vlaneseq
        %v1126 = vshrl.u32 %v1125, 7
        %v1127 = vsub.s32 %v1124, %v1126
        %v1128 = vrot.slane %v1120, %v1127
        %v1130 = vunpack.c.l.s4 1983009808
        %v1131 = vunpack.c.0.s8 %v1130
        %v1132 = vlaneseq
        %v1133 = vshrl.u32 %v1132, 7
        %v1134 = vsub.s32 %v1131, %v1133
        %v1135 = vrot.slane %v1121, %v1134
        %v1136 = vcombine.low %v1112, %v1128
        %v1137 = vcombine.high %v1112, %v1128
        %v1139 = vunpack.c.l.s4 1934713408
        %v1140 = vunpack.c.0.s8 %v1139
        %v1141 = vlaneseq
        %v1142 = vshrl.u32 %v1141, 7
        %v1143 = vsub.s32 %v1140, %v1142
        %v1144 = vrot.slane %v1136, %v1143
        %v1146 = vunpack.c.l.s4 1934713408
        %v1147 = vunpack.c.0.s8 %v1146
        %v1148 = vlaneseq
        %v1149 = vshrl.u32 %v1148, 7
        %v1150 = vsub.s32 %v1147, %v1149
        %v1151 = vrot.slane %v1137, %v1150
        %v1152 = vcombine.low %v1119, %v1135
        %v1153 = vcombine.high %v1119, %v1135
        %v1155 = vunpack.c.l.s4 1934713408
        %v1156 = vunpack.c.0.s8 %v1155
        %v1157 = vlaneseq
        %v1158 = vshrl.u32 %v1157, 7
        %v1159 = vsub.s32 %v1156, %v1158
        %v1160 = vrot.slane %v1152, %v1159
        %v1162 = vunpack.c.l.s4 1934713408
        %v1163 = vunpack.c.0.s8 %v1162
        %v1164 = vlaneseq
        %v1165 = vshrl.u32 %v1164, 7
        %v1166 = vsub.s32 %v1163, %v1165
        %v1167 = vrot.slane %v1153, %v1166
        %v1168 = vcombine.high %v1144, 0.0
        %v1169 = vcombine.high %v1151, 0.0
        %v1170 = vcombine.high %v1160, 0.0
        %v1171 = vcombine.high %v1167, 0.0
        %v1172 = vcombine.low %v1083, %v1091
        %v1173 = vcombine.high %v1083, %v1091
        %v1175 = vunpack.c.l.s4 1983009808
        %v1176 = vunpack.c.0.s8 %v1175
        %v1177 = vlaneseq
        %v1178 = vshrl.u32 %v1177, 7
        %v1179 = vsub.s32 %v1176, %v1178
        %v1180 = vrot.slane %v1172, %v1179
        %v1182 = vunpack.c.l.s4 1983009808
        %v1183 = vunpack.c.0.s8 %v1182
        %v1184 = vlaneseq
        %v1185 = vshrl.u32 %v1184, 7
        %v1186 = vsub.s32 %v1183, %v1185
        %v1187 = vrot.slane %v1173, %v1186
        %v1188 = vcombine.low %v1087, %v1095
        %v1189 = vcombine.high %v1087, %v1095
        %v1191 = vunpack.c.l.s4 1983009808
        %v1192 = vunpack.c.0.s8 %v1191
        %v1193 = vlaneseq
        %v1194 = vshrl.u32 %v1193, 7
        %v1195 = vsub.s32 %v1192, %v1194
        %v1196 = vrot.slane %v1188, %v1195
        %v1198 = vunpack.c.l.s4 1983009808
        %v1199 = vunpack.c.0.s8 %v1198
        %v1200 = vlaneseq
        %v1201 = vshrl.u32 %v1200, 7
        %v1202 = vsub.s32 %v1199, %v1201
        %v1203 = vrot.slane %v1189, %v1202
        %v1204 = vcombine.low %v1180, %v1196
        %v1205 = vcombine.high %v1180, %v1196
        %v1207 = vunpack.c.l.s4 1934713408
        %v1208 = vunpack.c.0.s8 %v1207
        %v1209 = vlaneseq
        %v1210 = vshrl.u32 %v1209, 7
        %v1211 = vsub.s32 %v1208, %v1210
        %v1212 = vrot.slane %v1204, %v1211
        %v1214 = vunpack.c.l.s4 1934713408
        %v1215 = vunpack.c.0.s8 %v1214
        %v1216 = vlaneseq
        %v1217 = vshrl.u32 %v1216, 7
        %v1218 = vsub.s32 %v1215, %v1217
        %v1219 = vrot.slane %v1205, %v1218
        %v1220 = vcombine.low %v1187, %v1203
        %v1222 = vunpack.c.l.s4 1934713408
        %v1223 = vunpack.c.0.s8 %v1222
        %v1224 = vlaneseq
        %v1225 = vshrl.u32 %v1224, 7
        %v1226 = vsub.s32 %v1223, %v1225
        %v1227 = vrot.slane %v1220, %v1226
        %v1228 = vcombine.high %v1212, 0.0
        %v1229 = vcombine.high %v1219, 0.0
        %v1230 = vcombine.high %v1227, 0.0
        %1232 = vrot.lane.b32.xlu0 %v1168, 14
        %v1233 = vpop.permute.xlu0 %1232
        %1236 = vrot.lane.b32.xlu0 %v1151, 28
        %v1237 = vpop.permute.xlu0 %1236
        %1240 = vrot.lane.b32.xlu0 %v1169, 42
        %v1241 = vpop.permute.xlu0 %1240
        %1244 = vrot.lane.b32.xlu0 %v1160, 56
        %v1245 = vpop.permute.xlu0 %1244
        %1248 = vrot.lane.b32.xlu0 %v1170, 70
        %v1249 = vpop.permute.xlu0 %1248
        %1252 = vrot.lane.b32.xlu0 %v1167, 84
        %v1253 = vpop.permute.xlu0 %1252
        %1256 = vrot.lane.b32.xlu0 %v1171, 98
        %v1257 = vpop.permute.xlu0 %1256
        %1260 = vrot.lane.b32.xlu0 %v1212, 112
        %v1261 = vpop.permute.xlu0 %1260
        %1264 = vrot.lane.b32.xlu0 %v1228, 126
        %v1265 = vpop.permute.xlu0 %1264
        %1268 = vrot.lane.b32.xlu0 %v1219, 12
        %v1269 = vpop.permute.xlu0 %1268
        %1272 = vrot.lane.b32.xlu0 %v1229, 26
        %v1273 = vpop.permute.xlu0 %1272
        %1276 = vrot.lane.b32.xlu0 %v1227, 40
        %v1277 = vpop.permute.xlu0 %1276
        %1280 = vrot.lane.b32.xlu0 %v1230, 54
        %v1281 = vpop.permute.xlu0 %1280
        %v1283 = vsel %vm401, %v1144, %v1233
        %v1284 = vsel %vm403, %v1283, %v1237
        %v1285 = vsel %vm405, %v1284, %v1241
        %v1286 = vsel %vm407, %v1285, %v1245
        %v1287 = vsel %vm409, %v1286, %v1249
        %v1288 = vsel %vm411, %v1287, %v1253
        %v1289 = vsel %vm413, %v1288, %v1257
        %v1290 = vsel %vm415, %v1289, %v1261
        %v1291 = vsel %vm417, %v1290, %v1265
        %v1292 = vsel %vm419, %v1265, %v1269
        %v1293 = vsel %vm421, %v1292, %v1273
        %v1294 = vsel %vm423, %v1293, %v1277
        %v1295 = vsel %vm425, %v1294, %v1281
        %1296 = vrot.lane.b32.xlu0 %v870, 126
        %v1297 = vpop.permute.xlu0 %1296
        %1298 = vrot.lane.b32.xlu0 %v869, 126
        %v1299 = vpop.permute.xlu0 %1298
        %1300 = vrot.lane.b32.xlu0 %v873, 126
        %v1301 = vpop.permute.xlu0 %1300
        %1302 = vrot.lane.b32.xlu0 %v872, 126
        %v1303 = vpop.permute.xlu0 %1302
        %1304 = vrot.lane.b32.xlu0 %v876, 126
        %v1305 = vpop.permute.xlu0 %1304
        %1306 = vrot.lane.b32.xlu0 %v875, 126
        %v1307 = vpop.permute.xlu0 %1306
        %1308 = vrot.lane.b32.xlu0 %v879, 126
        %v1309 = vpop.permute.xlu0 %1308
        %1310 = vrot.lane.b32.xlu0 %v878, 126
        %v1311 = vpop.permute.xlu0 %1310
        %v1320 = vcombine.low %v1297, %v1305
        %v1321 = vcombine.high %v1297, %v1305
        %v1323 = vunpack.c.l.s4 1983009808
        %v1324 = vunpack.c.0.s8 %v1323
        %v1325 = vlaneseq
        %v1326 = vshrl.u32 %v1325, 7
        %v1327 = vsub.s32 %v1324, %v1326
        %v1328 = vrot.slane %v1320, %v1327
        %v1330 = vunpack.c.l.s4 1983009808
        %v1331 = vunpack.c.0.s8 %v1330
        %v1332 = vlaneseq
        %v1333 = vshrl.u32 %v1332, 7
        %v1334 = vsub.s32 %v1331, %v1333
        %v1335 = vrot.slane %v1321, %v1334
        %v1336 = vcombine.low %v1301, %v1309
        %v1337 = vcombine.high %v1301, %v1309
        %v1339 = vunpack.c.l.s4 1983009808
        %v1340 = vunpack.c.0.s8 %v1339
        %v1341 = vlaneseq
        %v1342 = vshrl.u32 %v1341, 7
        %v1343 = vsub.s32 %v1340, %v1342
        %v1344 = vrot.slane %v1336, %v1343
        %v1346 = vunpack.c.l.s4 1983009808
        %v1347 = vunpack.c.0.s8 %v1346
        %v1348 = vlaneseq
        %v1349 = vshrl.u32 %v1348, 7
        %v1350 = vsub.s32 %v1347, %v1349
        %v1351 = vrot.slane %v1337, %v1350
        %v1352 = vcombine.low %v1328, %v1344
        %v1353 = vcombine.high %v1328, %v1344
        %v1355 = vunpack.c.l.s4 1934713408
        %v1356 = vunpack.c.0.s8 %v1355
        %v1357 = vlaneseq
        %v1358 = vshrl.u32 %v1357, 7
        %v1359 = vsub.s32 %v1356, %v1358
        %v1360 = vrot.slane %v1352, %v1359
        %v1362 = vunpack.c.l.s4 1934713408
        %v1363 = vunpack.c.0.s8 %v1362
        %v1364 = vlaneseq
        %v1365 = vshrl.u32 %v1364, 7
        %v1366 = vsub.s32 %v1363, %v1365
        %v1367 = vrot.slane %v1353, %v1366
        %v1368 = vcombine.low %v1335, %v1351
        %v1369 = vcombine.high %v1335, %v1351
        %v1371 = vunpack.c.l.s4 1934713408
        %v1372 = vunpack.c.0.s8 %v1371
        %v1373 = vlaneseq
        %v1374 = vshrl.u32 %v1373, 7
        %v1375 = vsub.s32 %v1372, %v1374
        %v1376 = vrot.slane %v1368, %v1375
        %v1378 = vunpack.c.l.s4 1934713408
        %v1379 = vunpack.c.0.s8 %v1378
        %v1380 = vlaneseq
        %v1381 = vshrl.u32 %v1380, 7
        %v1382 = vsub.s32 %v1379, %v1381
        %v1383 = vrot.slane %v1369, %v1382
        %v1384 = vcombine.high %v1360, 0.0
        %v1385 = vcombine.high %v1367, 0.0
        %v1386 = vcombine.high %v1376, 0.0
        %v1387 = vcombine.high %v1383, 0.0
        %v1388 = vcombine.low %v1299, %v1307
        %v1389 = vcombine.high %v1299, %v1307
        %v1391 = vunpack.c.l.s4 1983009808
        %v1392 = vunpack.c.0.s8 %v1391
        %v1393 = vlaneseq
        %v1394 = vshrl.u32 %v1393, 7
        %v1395 = vsub.s32 %v1392, %v1394
        %v1396 = vrot.slane %v1388, %v1395
        %v1398 = vunpack.c.l.s4 1983009808
        %v1399 = vunpack.c.0.s8 %v1398
        %v1400 = vlaneseq
        %v1401 = vshrl.u32 %v1400, 7
        %v1402 = vsub.s32 %v1399, %v1401
        %v1403 = vrot.slane %v1389, %v1402
        %v1404 = vcombine.low %v1303, %v1311
        %v1405 = vcombine.high %v1303, %v1311
        %v1407 = vunpack.c.l.s4 1983009808
        %v1408 = vunpack.c.0.s8 %v1407
        %v1409 = vlaneseq
        %v1410 = vshrl.u32 %v1409, 7
        %v1411 = vsub.s32 %v1408, %v1410
        %v1412 = vrot.slane %v1404, %v1411
        %v1414 = vunpack.c.l.s4 1983009808
        %v1415 = vunpack.c.0.s8 %v1414
        %v1416 = vlaneseq
        %v1417 = vshrl.u32 %v1416, 7
        %v1418 = vsub.s32 %v1415, %v1417
        %v1419 = vrot.slane %v1405, %v1418
        %v1420 = vcombine.low %v1396, %v1412
        %v1421 = vcombine.high %v1396, %v1412
        %v1423 = vunpack.c.l.s4 1934713408
        %v1424 = vunpack.c.0.s8 %v1423
        %v1425 = vlaneseq
        %v1426 = vshrl.u32 %v1425, 7
        %v1427 = vsub.s32 %v1424, %v1426
        %v1428 = vrot.slane %v1420, %v1427
        %v1430 = vunpack.c.l.s4 1934713408
        %v1431 = vunpack.c.0.s8 %v1430
        %v1432 = vlaneseq
        %v1433 = vshrl.u32 %v1432, 7
        %v1434 = vsub.s32 %v1431, %v1433
        %v1435 = vrot.slane %v1421, %v1434
        %v1436 = vcombine.low %v1403, %v1419
        %v1438 = vunpack.c.l.s4 1934713408
        %v1439 = vunpack.c.0.s8 %v1438
        %v1440 = vlaneseq
        %v1441 = vshrl.u32 %v1440, 7
        %v1442 = vsub.s32 %v1439, %v1441
        %v1443 = vrot.slane %v1436, %v1442
        %v1444 = vcombine.high %v1428, 0.0
        %v1445 = vcombine.high %v1435, 0.0
        %v1446 = vcombine.high %v1443, 0.0
        %1448 = vrot.lane.b32.xlu0 %v1384, 14
        %v1449 = vpop.permute.xlu0 %1448
        %1452 = vrot.lane.b32.xlu0 %v1367, 28
        %v1453 = vpop.permute.xlu0 %1452
        %1456 = vrot.lane.b32.xlu0 %v1385, 42
        %v1457 = vpop.permute.xlu0 %1456
        %1460 = vrot.lane.b32.xlu0 %v1376, 56
        %v1461 = vpop.permute.xlu0 %1460
        %1464 = vrot.lane.b32.xlu0 %v1386, 70
        %v1465 = vpop.permute.xlu0 %1464
        %1468 = vrot.lane.b32.xlu0 %v1383, 84
        %v1469 = vpop.permute.xlu0 %1468
        %1472 = vrot.lane.b32.xlu0 %v1387, 98
        %v1473 = vpop.permute.xlu0 %1472
        %1476 = vrot.lane.b32.xlu0 %v1428, 112
        %v1477 = vpop.permute.xlu0 %1476
        %1480 = vrot.lane.b32.xlu0 %v1444, 126
        %v1481 = vpop.permute.xlu0 %1480
        %1484 = vrot.lane.b32.xlu0 %v1435, 12
        %v1485 = vpop.permute.xlu0 %1484
        %1488 = vrot.lane.b32.xlu0 %v1445, 26
        %v1489 = vpop.permute.xlu0 %1488
        %1492 = vrot.lane.b32.xlu0 %v1443, 40
        %v1493 = vpop.permute.xlu0 %1492
        %1496 = vrot.lane.b32.xlu0 %v1446, 54
        %v1497 = vpop.permute.xlu0 %1496
        %v1499 = vsel %vm401, %v1360, %v1449
        %v1500 = vsel %vm403, %v1499, %v1453
        %v1501 = vsel %vm405, %v1500, %v1457
        %v1502 = vsel %vm407, %v1501, %v1461
        %v1503 = vsel %vm409, %v1502, %v1465
        %v1504 = vsel %vm411, %v1503, %v1469
        %v1505 = vsel %vm413, %v1504, %v1473
        %v1506 = vsel %vm415, %v1505, %v1477
        %v1507 = vsel %vm417, %v1506, %v1481
        %v1508 = vsel %vm419, %v1481, %v1485
        %v1509 = vsel %vm421, %v1508, %v1489
        %v1510 = vsel %vm423, %v1509, %v1493
        %v1511 = vsel %vm425, %v1510, %v1497
        %vm1512 = vcmask 1045504
        %v1513 = vrot.slane %v213, 2
        %v1514 = vrot.slane %v214, 2
        %v1515 = vsel %vm1512, %v1513, %v1514
        %v1516 = vrot.slane %v215, 2
        %v1517 = vrot.slane %v216, 2
        %v1518 = vsel %vm1512, %v1516, %v1517
        %v1519 = vrot.slane %v217, 2
        %v1520 = vrot.slane %v218, 2
        %v1521 = vsel %vm1512, %v1519, %v1520
        %v1522 = vrot.slane %v219, 2
        %v1523 = vrot.slane %v220, 2
        %v1524 = vsel %vm1512, %v1522, %v1523
        %v1533 = vcombine.low %v1515, %v1521
        %v1534 = vcombine.high %v1515, %v1521
        %v1536 = vunpack.c.l.s4 1983009808
        %v1537 = vunpack.c.0.s8 %v1536
        %v1538 = vlaneseq
        %v1539 = vshrl.u32 %v1538, 7
        %v1540 = vsub.s32 %v1537, %v1539
        %v1541 = vrot.slane %v1533, %v1540
        %v1543 = vunpack.c.l.s4 1983009808
        %v1544 = vunpack.c.0.s8 %v1543
        %v1545 = vlaneseq
        %v1546 = vshrl.u32 %v1545, 7
        %v1547 = vsub.s32 %v1544, %v1546
        %v1548 = vrot.slane %v1534, %v1547
        %v1549 = vcombine.low %v1518, %v1524
        %v1550 = vcombine.high %v1518, %v1524
        %v1552 = vunpack.c.l.s4 1983009808
        %v1553 = vunpack.c.0.s8 %v1552
        %v1554 = vlaneseq
        %v1555 = vshrl.u32 %v1554, 7
        %v1556 = vsub.s32 %v1553, %v1555
        %v1557 = vrot.slane %v1549, %v1556
        %v1559 = vunpack.c.l.s4 1983009808
        %v1560 = vunpack.c.0.s8 %v1559
        %v1561 = vlaneseq
        %v1562 = vshrl.u32 %v1561, 7
        %v1563 = vsub.s32 %v1560, %v1562
        %v1564 = vrot.slane %v1550, %v1563
        %v1565 = vcombine.low %v1541, %v1557
        %v1566 = vcombine.high %v1541, %v1557
        %v1568 = vunpack.c.l.s4 1934713408
        %v1569 = vunpack.c.0.s8 %v1568
        %v1570 = vlaneseq
        %v1571 = vshrl.u32 %v1570, 7
        %v1572 = vsub.s32 %v1569, %v1571
        %v1573 = vrot.slane %v1565, %v1572
        %v1575 = vunpack.c.l.s4 1934713408
        %v1576 = vunpack.c.0.s8 %v1575
        %v1577 = vlaneseq
        %v1578 = vshrl.u32 %v1577, 7
        %v1579 = vsub.s32 %v1576, %v1578
        %v1580 = vrot.slane %v1566, %v1579
        %v1581 = vcombine.low %v1548, %v1564
        %v1582 = vcombine.high %v1548, %v1564
        %v1584 = vunpack.c.l.s4 1934713408
        %v1585 = vunpack.c.0.s8 %v1584
        %v1586 = vlaneseq
        %v1587 = vshrl.u32 %v1586, 7
        %v1588 = vsub.s32 %v1585, %v1587
        %v1589 = vrot.slane %v1581, %v1588
        %v1591 = vunpack.c.l.s4 1934713408
        %v1592 = vunpack.c.0.s8 %v1591
        %v1593 = vlaneseq
        %v1594 = vshrl.u32 %v1593, 7
        %v1595 = vsub.s32 %v1592, %v1594
        %v1596 = vrot.slane %v1582, %v1595
        %v1597 = vcombine.high %v1573, 0.0
        %v1598 = vcombine.high %v1580, 0.0
        %v1599 = vcombine.high %v1589, 0.0
        %v1600 = vcombine.high %v1596, 0.0
        %v1601 = vcombine.low %v1514, %v1520
        %v1602 = vcombine.high %v1514, %v1520
        %v1604 = vunpack.c.l.s4 1983009808
        %v1605 = vunpack.c.0.s8 %v1604
        %v1606 = vlaneseq
        %v1607 = vshrl.u32 %v1606, 7
        %v1608 = vsub.s32 %v1605, %v1607
        %v1609 = vrot.slane %v1601, %v1608
        %v1611 = vunpack.c.l.s4 1983009808
        %v1612 = vunpack.c.0.s8 %v1611
        %v1613 = vlaneseq
        %v1614 = vshrl.u32 %v1613, 7
        %v1615 = vsub.s32 %v1612, %v1614
        %v1616 = vrot.slane %v1602, %v1615
        %v1617 = vcombine.low %v1517, %v1523
        %v1618 = vcombine.high %v1517, %v1523
        %v1620 = vunpack.c.l.s4 1983009808
        %v1621 = vunpack.c.0.s8 %v1620
        %v1622 = vlaneseq
        %v1623 = vshrl.u32 %v1622, 7
        %v1624 = vsub.s32 %v1621, %v1623
        %v1625 = vrot.slane %v1617, %v1624
        %v1627 = vunpack.c.l.s4 1983009808
        %v1628 = vunpack.c.0.s8 %v1627
        %v1629 = vlaneseq
        %v1630 = vshrl.u32 %v1629, 7
        %v1631 = vsub.s32 %v1628, %v1630
        %v1632 = vrot.slane %v1618, %v1631
        %v1633 = vcombine.low %v1609, %v1625
        %v1634 = vcombine.high %v1609, %v1625
        %v1636 = vunpack.c.l.s4 1934713408
        %v1637 = vunpack.c.0.s8 %v1636
        %v1638 = vlaneseq
        %v1639 = vshrl.u32 %v1638, 7
        %v1640 = vsub.s32 %v1637, %v1639
        %v1641 = vrot.slane %v1633, %v1640
        %v1643 = vunpack.c.l.s4 1934713408
        %v1644 = vunpack.c.0.s8 %v1643
        %v1645 = vlaneseq
        %v1646 = vshrl.u32 %v1645, 7
        %v1647 = vsub.s32 %v1644, %v1646
        %v1648 = vrot.slane %v1634, %v1647
        %v1649 = vcombine.low %v1616, %v1632
        %v1651 = vunpack.c.l.s4 1934713408
        %v1652 = vunpack.c.0.s8 %v1651
        %v1653 = vlaneseq
        %v1654 = vshrl.u32 %v1653, 7
        %v1655 = vsub.s32 %v1652, %v1654
        %v1656 = vrot.slane %v1649, %v1655
        %v1657 = vcombine.high %v1641, 0.0
        %v1658 = vcombine.high %v1648, 0.0
        %v1659 = vcombine.high %v1656, 0.0
        %1661 = vrot.lane.b32.xlu0 %v1597, 14
        %v1662 = vpop.permute.xlu0 %1661
        %1665 = vrot.lane.b32.xlu0 %v1580, 28
        %v1666 = vpop.permute.xlu0 %1665
        %1669 = vrot.lane.b32.xlu0 %v1598, 42
        %v1670 = vpop.permute.xlu0 %1669
        %1673 = vrot.lane.b32.xlu0 %v1589, 56
        %v1674 = vpop.permute.xlu0 %1673
        %1677 = vrot.lane.b32.xlu0 %v1599, 70
        %v1678 = vpop.permute.xlu0 %1677
        %1681 = vrot.lane.b32.xlu0 %v1596, 84
        %v1682 = vpop.permute.xlu0 %1681
        %1685 = vrot.lane.b32.xlu0 %v1600, 98
        %v1686 = vpop.permute.xlu0 %1685
        %1689 = vrot.lane.b32.xlu0 %v1641, 112
        %v1690 = vpop.permute.xlu0 %1689
        %1693 = vrot.lane.b32.xlu0 %v1657, 126
        %v1694 = vpop.permute.xlu0 %1693
        %1697 = vrot.lane.b32.xlu0 %v1648, 12
        %v1698 = vpop.permute.xlu0 %1697
        %1701 = vrot.lane.b32.xlu0 %v1658, 26
        %v1702 = vpop.permute.xlu0 %1701
        %1705 = vrot.lane.b32.xlu0 %v1656, 40
        %v1706 = vpop.permute.xlu0 %1705
        %1709 = vrot.lane.b32.xlu0 %v1659, 54
        %v1710 = vpop.permute.xlu0 %1709
        %v1712 = vsel %vm401, %v1573, %v1662
        %v1713 = vsel %vm403, %v1712, %v1666
        %v1714 = vsel %vm405, %v1713, %v1670
        %v1715 = vsel %vm407, %v1714, %v1674
        %v1716 = vsel %vm409, %v1715, %v1678
        %v1717 = vsel %vm411, %v1716, %v1682
        %v1718 = vsel %vm413, %v1717, %v1686
        %v1719 = vsel %vm415, %v1718, %v1690
        %v1720 = vsel %vm417, %v1719, %v1694
        %v1721 = vsel %vm419, %v1694, %v1698
        %v1722 = vsel %vm421, %v1721, %v1702
        %v1723 = vsel %vm423, %v1722, %v1706
        %v1724 = vsel %vm425, %v1723, %v1710
        %1725 = vrot.lane.b32.xlu0 %v1515, 127
        %v1726 = vpop.permute.xlu0 %1725
        %1727 = vrot.lane.b32.xlu0 %v1514, 127
        %v1728 = vpop.permute.xlu0 %1727
        %1729 = vrot.lane.b32.xlu0 %v1518, 127
        %v1730 = vpop.permute.xlu0 %1729
        %1731 = vrot.lane.b32.xlu0 %v1517, 127
        %v1732 = vpop.permute.xlu0 %1731
        %1733 = vrot.lane.b32.xlu0 %v1521, 127
        %v1734 = vpop.permute.xlu0 %1733
        %1735 = vrot.lane.b32.xlu0 %v1520, 127
        %v1736 = vpop.permute.xlu0 %1735
        %1737 = vrot.lane.b32.xlu0 %v1524, 127
        %v1738 = vpop.permute.xlu0 %1737
        %1739 = vrot.lane.b32.xlu0 %v1523, 127
        %v1740 = vpop.permute.xlu0 %1739
        %v1749 = vcombine.low %v1726, %v1734
        %v1750 = vcombine.high %v1726, %v1734
        %v1752 = vunpack.c.l.s4 1983009808
        %v1753 = vunpack.c.0.s8 %v1752
        %v1754 = vlaneseq
        %v1755 = vshrl.u32 %v1754, 7
        %v1756 = vsub.s32 %v1753, %v1755
        %v1757 = vrot.slane %v1749, %v1756
        %v1759 = vunpack.c.l.s4 1983009808
        %v1760 = vunpack.c.0.s8 %v1759
        %v1761 = vlaneseq
        %v1762 = vshrl.u32 %v1761, 7
        %v1763 = vsub.s32 %v1760, %v1762
        %v1764 = vrot.slane %v1750, %v1763
        %v1765 = vcombine.low %v1730, %v1738
        %v1766 = vcombine.high %v1730, %v1738
        %v1768 = vunpack.c.l.s4 1983009808
        %v1769 = vunpack.c.0.s8 %v1768
        %v1770 = vlaneseq
        %v1771 = vshrl.u32 %v1770, 7
        %v1772 = vsub.s32 %v1769, %v1771
        %v1773 = vrot.slane %v1765, %v1772
        %v1775 = vunpack.c.l.s4 1983009808
        %v1776 = vunpack.c.0.s8 %v1775
        %v1777 = vlaneseq
        %v1778 = vshrl.u32 %v1777, 7
        %v1779 = vsub.s32 %v1776, %v1778
        %v1780 = vrot.slane %v1766, %v1779
        %v1781 = vcombine.low %v1757, %v1773
        %v1782 = vcombine.high %v1757, %v1773
        %v1784 = vunpack.c.l.s4 1934713408
        %v1785 = vunpack.c.0.s8 %v1784
        %v1786 = vlaneseq
        %v1787 = vshrl.u32 %v1786, 7
        %v1788 = vsub.s32 %v1785, %v1787
        %v1789 = vrot.slane %v1781, %v1788
        %v1791 = vunpack.c.l.s4 1934713408
        %v1792 = vunpack.c.0.s8 %v1791
        %v1793 = vlaneseq
        %v1794 = vshrl.u32 %v1793, 7
        %v1795 = vsub.s32 %v1792, %v1794
        %v1796 = vrot.slane %v1782, %v1795
        %v1797 = vcombine.low %v1764, %v1780
        %v1798 = vcombine.high %v1764, %v1780
        %v1800 = vunpack.c.l.s4 1934713408
        %v1801 = vunpack.c.0.s8 %v1800
        %v1802 = vlaneseq
        %v1803 = vshrl.u32 %v1802, 7
        %v1804 = vsub.s32 %v1801, %v1803
        %v1805 = vrot.slane %v1797, %v1804
        %v1807 = vunpack.c.l.s4 1934713408
        %v1808 = vunpack.c.0.s8 %v1807
        %v1809 = vlaneseq
        %v1810 = vshrl.u32 %v1809, 7
        %v1811 = vsub.s32 %v1808, %v1810
        %v1812 = vrot.slane %v1798, %v1811
        %v1813 = vcombine.high %v1789, 0.0
        %v1814 = vcombine.high %v1796, 0.0
        %v1815 = vcombine.high %v1805, 0.0
        %v1816 = vcombine.high %v1812, 0.0
        %v1817 = vcombine.low %v1728, %v1736
        %v1818 = vcombine.high %v1728, %v1736
        %v1820 = vunpack.c.l.s4 1983009808
        %v1821 = vunpack.c.0.s8 %v1820
        %v1822 = vlaneseq
        %v1823 = vshrl.u32 %v1822, 7
        %v1824 = vsub.s32 %v1821, %v1823
        %v1825 = vrot.slane %v1817, %v1824
        %v1827 = vunpack.c.l.s4 1983009808
        %v1828 = vunpack.c.0.s8 %v1827
        %v1829 = vlaneseq
        %v1830 = vshrl.u32 %v1829, 7
        %v1831 = vsub.s32 %v1828, %v1830
        %v1832 = vrot.slane %v1818, %v1831
        %v1833 = vcombine.low %v1732, %v1740
        %v1834 = vcombine.high %v1732, %v1740
        %v1836 = vunpack.c.l.s4 1983009808
        %v1837 = vunpack.c.0.s8 %v1836
        %v1838 = vlaneseq
        %v1839 = vshrl.u32 %v1838, 7
        %v1840 = vsub.s32 %v1837, %v1839
        %v1841 = vrot.slane %v1833, %v1840
        %v1843 = vunpack.c.l.s4 1983009808
        %v1844 = vunpack.c.0.s8 %v1843
        %v1845 = vlaneseq
        %v1846 = vshrl.u32 %v1845, 7
        %v1847 = vsub.s32 %v1844, %v1846
        %v1848 = vrot.slane %v1834, %v1847
        %v1849 = vcombine.low %v1825, %v1841
        %v1850 = vcombine.high %v1825, %v1841
        %v1852 = vunpack.c.l.s4 1934713408
        %v1853 = vunpack.c.0.s8 %v1852
        %v1854 = vlaneseq
        %v1855 = vshrl.u32 %v1854, 7
        %v1856 = vsub.s32 %v1853, %v1855
        %v1857 = vrot.slane %v1849, %v1856
        %v1859 = vunpack.c.l.s4 1934713408
        %v1860 = vunpack.c.0.s8 %v1859
        %v1861 = vlaneseq
        %v1862 = vshrl.u32 %v1861, 7
        %v1863 = vsub.s32 %v1860, %v1862
        %v1864 = vrot.slane %v1850, %v1863
        %v1865 = vcombine.low %v1832, %v1848
        %v1867 = vunpack.c.l.s4 1934713408
        %v1868 = vunpack.c.0.s8 %v1867
        %v1869 = vlaneseq
        %v1870 = vshrl.u32 %v1869, 7
        %v1871 = vsub.s32 %v1868, %v1870
        %v1872 = vrot.slane %v1865, %v1871
        %v1873 = vcombine.high %v1857, 0.0
        %v1874 = vcombine.high %v1864, 0.0
        %v1875 = vcombine.high %v1872, 0.0
        %1877 = vrot.lane.b32.xlu0 %v1813, 14
        %v1878 = vpop.permute.xlu0 %1877
        %1881 = vrot.lane.b32.xlu0 %v1796, 28
        %v1882 = vpop.permute.xlu0 %1881
        %1885 = vrot.lane.b32.xlu0 %v1814, 42
        %v1886 = vpop.permute.xlu0 %1885
        %1889 = vrot.lane.b32.xlu0 %v1805, 56
        %v1890 = vpop.permute.xlu0 %1889
        %1893 = vrot.lane.b32.xlu0 %v1815, 70
        %v1894 = vpop.permute.xlu0 %1893
        %1897 = vrot.lane.b32.xlu0 %v1812, 84
        %v1898 = vpop.permute.xlu0 %1897
        %1901 = vrot.lane.b32.xlu0 %v1816, 98
        %v1902 = vpop.permute.xlu0 %1901
        %1905 = vrot.lane.b32.xlu0 %v1857, 112
        %v1906 = vpop.permute.xlu0 %1905
        %1909 = vrot.lane.b32.xlu0 %v1873, 126
        %v1910 = vpop.permute.xlu0 %1909
        %1913 = vrot.lane.b32.xlu0 %v1864, 12
        %v1914 = vpop.permute.xlu0 %1913
        %1917 = vrot.lane.b32.xlu0 %v1874, 26
        %v1918 = vpop.permute.xlu0 %1917
        %1921 = vrot.lane.b32.xlu0 %v1872, 40
        %v1922 = vpop.permute.xlu0 %1921
        %1925 = vrot.lane.b32.xlu0 %v1875, 54
        %v1926 = vpop.permute.xlu0 %1925
        %v1928 = vsel %vm401, %v1789, %v1878
        %v1929 = vsel %vm403, %v1928, %v1882
        %v1930 = vsel %vm405, %v1929, %v1886
        %v1931 = vsel %vm407, %v1930, %v1890
        %v1932 = vsel %vm409, %v1931, %v1894
        %v1933 = vsel %vm411, %v1932, %v1898
        %v1934 = vsel %vm413, %v1933, %v1902
        %v1935 = vsel %vm415, %v1934, %v1906
        %v1936 = vsel %vm417, %v1935, %v1910
        %v1937 = vsel %vm419, %v1910, %v1914
        %v1938 = vsel %vm421, %v1937, %v1918
        %v1939 = vsel %vm423, %v1938, %v1922
        %v1940 = vsel %vm425, %v1939, %v1926
        %1941 = vrot.lane.b32.xlu0 %v1515, 126
        %v1942 = vpop.permute.xlu0 %1941
        %1943 = vrot.lane.b32.xlu0 %v1514, 126
        %v1944 = vpop.permute.xlu0 %1943
        %1945 = vrot.lane.b32.xlu0 %v1518, 126
        %v1946 = vpop.permute.xlu0 %1945
        %1947 = vrot.lane.b32.xlu0 %v1517, 126
        %v1948 = vpop.permute.xlu0 %1947
        %1949 = vrot.lane.b32.xlu0 %v1521, 126
        %v1950 = vpop.permute.xlu0 %1949
        %1951 = vrot.lane.b32.xlu0 %v1520, 126
        %v1952 = vpop.permute.xlu0 %1951
        %1953 = vrot.lane.b32.xlu0 %v1524, 126
        %v1954 = vpop.permute.xlu0 %1953
        %1955 = vrot.lane.b32.xlu0 %v1523, 126
        %v1956 = vpop.permute.xlu0 %1955
        %v1965 = vcombine.low %v1942, %v1950
        %v1966 = vcombine.high %v1942, %v1950
        %v1968 = vunpack.c.l.s4 1983009808
        %v1969 = vunpack.c.0.s8 %v1968
        %v1970 = vlaneseq
        %v1971 = vshrl.u32 %v1970, 7
        %v1972 = vsub.s32 %v1969, %v1971
        %v1973 = vrot.slane %v1965, %v1972
        %v1975 = vunpack.c.l.s4 1983009808
        %v1976 = vunpack.c.0.s8 %v1975
        %v1977 = vlaneseq
        %v1978 = vshrl.u32 %v1977, 7
        %v1979 = vsub.s32 %v1976, %v1978
        %v1980 = vrot.slane %v1966, %v1979
        %v1981 = vcombine.low %v1946, %v1954
        %v1982 = vcombine.high %v1946, %v1954
        %v1984 = vunpack.c.l.s4 1983009808
        %v1985 = vunpack.c.0.s8 %v1984
        %v1986 = vlaneseq
        %v1987 = vshrl.u32 %v1986, 7
        %v1988 = vsub.s32 %v1985, %v1987
        %v1989 = vrot.slane %v1981, %v1988
        %v1991 = vunpack.c.l.s4 1983009808
        %v1992 = vunpack.c.0.s8 %v1991
        %v1993 = vlaneseq
        %v1994 = vshrl.u32 %v1993, 7
        %v1995 = vsub.s32 %v1992, %v1994
        %v1996 = vrot.slane %v1982, %v1995
        %v1997 = vcombine.low %v1973, %v1989
        %v1998 = vcombine.high %v1973, %v1989
        %v2000 = vunpack.c.l.s4 1934713408
        %v2001 = vunpack.c.0.s8 %v2000
        %v2002 = vlaneseq
        %v2003 = vshrl.u32 %v2002, 7
        %v2004 = vsub.s32 %v2001, %v2003
        %v2005 = vrot.slane %v1997, %v2004
        %v2007 = vunpack.c.l.s4 1934713408
        %v2008 = vunpack.c.0.s8 %v2007
        %v2009 = vlaneseq
        %v2010 = vshrl.u32 %v2009, 7
        %v2011 = vsub.s32 %v2008, %v2010
        %v2012 = vrot.slane %v1998, %v2011
        %v2013 = vcombine.low %v1980, %v1996
        %v2014 = vcombine.high %v1980, %v1996
        %v2016 = vunpack.c.l.s4 1934713408
        %v2017 = vunpack.c.0.s8 %v2016
        %v2018 = vlaneseq
        %v2019 = vshrl.u32 %v2018, 7
        %v2020 = vsub.s32 %v2017, %v2019
        %v2021 = vrot.slane %v2013, %v2020
        %v2023 = vunpack.c.l.s4 1934713408
        %v2024 = vunpack.c.0.s8 %v2023
        %v2025 = vlaneseq
        %v2026 = vshrl.u32 %v2025, 7
        %v2027 = vsub.s32 %v2024, %v2026
        %v2028 = vrot.slane %v2014, %v2027
        %v2029 = vcombine.high %v2005, 0.0
        %v2030 = vcombine.high %v2012, 0.0
        %v2031 = vcombine.high %v2021, 0.0
        %v2032 = vcombine.high %v2028, 0.0
        %v2033 = vcombine.low %v1944, %v1952
        %v2034 = vcombine.high %v1944, %v1952
        %v2036 = vunpack.c.l.s4 1983009808
        %v2037 = vunpack.c.0.s8 %v2036
        %v2038 = vlaneseq
        %v2039 = vshrl.u32 %v2038, 7
        %v2040 = vsub.s32 %v2037, %v2039
        %v2041 = vrot.slane %v2033, %v2040
        %v2043 = vunpack.c.l.s4 1983009808
        %v2044 = vunpack.c.0.s8 %v2043
        %v2045 = vlaneseq
        %v2046 = vshrl.u32 %v2045, 7
        %v2047 = vsub.s32 %v2044, %v2046
        %v2048 = vrot.slane %v2034, %v2047
        %v2049 = vcombine.low %v1948, %v1956
        %v2050 = vcombine.high %v1948, %v1956
        %v2052 = vunpack.c.l.s4 1983009808
        %v2053 = vunpack.c.0.s8 %v2052
        %v2054 = vlaneseq
        %v2055 = vshrl.u32 %v2054, 7
        %v2056 = vsub.s32 %v2053, %v2055
        %v2057 = vrot.slane %v2049, %v2056
        %v2059 = vunpack.c.l.s4 1983009808
        %v2060 = vunpack.c.0.s8 %v2059
        %v2061 = vlaneseq
        %v2062 = vshrl.u32 %v2061, 7
        %v2063 = vsub.s32 %v2060, %v2062
        %v2064 = vrot.slane %v2050, %v2063
        %v2065 = vcombine.low %v2041, %v2057
        %v2066 = vcombine.high %v2041, %v2057
        %v2068 = vunpack.c.l.s4 1934713408
        %v2069 = vunpack.c.0.s8 %v2068
        %v2070 = vlaneseq
        %v2071 = vshrl.u32 %v2070, 7
        %v2072 = vsub.s32 %v2069, %v2071
        %v2073 = vrot.slane %v2065, %v2072
        %v2075 = vunpack.c.l.s4 1934713408
        %v2076 = vunpack.c.0.s8 %v2075
        %v2077 = vlaneseq
        %v2078 = vshrl.u32 %v2077, 7
        %v2079 = vsub.s32 %v2076, %v2078
        %v2080 = vrot.slane %v2066, %v2079
        %v2081 = vcombine.low %v2048, %v2064
        %v2083 = vunpack.c.l.s4 1934713408
        %v2084 = vunpack.c.0.s8 %v2083
        %v2085 = vlaneseq
        %v2086 = vshrl.u32 %v2085, 7
        %v2087 = vsub.s32 %v2084, %v2086
        %v2088 = vrot.slane %v2081, %v2087
        %v2089 = vcombine.high %v2073, 0.0
        %v2090 = vcombine.high %v2080, 0.0
        %v2091 = vcombine.high %v2088, 0.0
        %2093 = vrot.lane.b32.xlu0 %v2029, 14
        %v2094 = vpop.permute.xlu0 %2093
        %2097 = vrot.lane.b32.xlu0 %v2012, 28
        %v2098 = vpop.permute.xlu0 %2097
        %2101 = vrot.lane.b32.xlu0 %v2030, 42
        %v2102 = vpop.permute.xlu0 %2101
        %2105 = vrot.lane.b32.xlu0 %v2021, 56
        %v2106 = vpop.permute.xlu0 %2105
        %2109 = vrot.lane.b32.xlu0 %v2031, 70
        %v2110 = vpop.permute.xlu0 %2109
        %2113 = vrot.lane.b32.xlu0 %v2028, 84
        %v2114 = vpop.permute.xlu0 %2113
        %2117 = vrot.lane.b32.xlu0 %v2032, 98
        %v2118 = vpop.permute.xlu0 %2117
        %2121 = vrot.lane.b32.xlu0 %v2073, 112
        %v2122 = vpop.permute.xlu0 %2121
        %2125 = vrot.lane.b32.xlu0 %v2089, 126
        %v2126 = vpop.permute.xlu0 %2125
        %2129 = vrot.lane.b32.xlu0 %v2080, 12
        %v2130 = vpop.permute.xlu0 %2129
        %2133 = vrot.lane.b32.xlu0 %v2090, 26
        %v2134 = vpop.permute.xlu0 %2133
        %2137 = vrot.lane.b32.xlu0 %v2088, 40
        %v2138 = vpop.permute.xlu0 %2137
        %2141 = vrot.lane.b32.xlu0 %v2091, 54
        %v2142 = vpop.permute.xlu0 %2141
        %v2144 = vsel %vm401, %v2005, %v2094
        %v2145 = vsel %vm403, %v2144, %v2098
        %v2146 = vsel %vm405, %v2145, %v2102
        %v2147 = vsel %vm407, %v2146, %v2106
        %v2148 = vsel %vm409, %v2147, %v2110
        %v2149 = vsel %vm411, %v2148, %v2114
        %v2150 = vsel %vm413, %v2149, %v2118
        %v2151 = vsel %vm415, %v2150, %v2122
        %v2152 = vsel %vm417, %v2151, %v2126
        %v2153 = vsel %vm419, %v2126, %v2130
        %v2154 = vsel %vm421, %v2153, %v2134
        %v2155 = vsel %vm423, %v2154, %v2138
        %v2156 = vsel %vm425, %v2155, %v2142
        %v2159 = vrot.slane %v646, 4
        %v2160 = vrot.slane %v650, 4
        %v2165 = vrot.slane %v1075, 4
        %v2166 = vrot.slane %v1079, 4
        %v2171 = vrot.slane %v1507, 4
        %v2172 = vrot.slane %v1511, 4
        %v2177 = vrot.slane %v1936, 4
        %v2178 = vrot.slane %v1940, 4
        %vm2181 = vcmask 1043456
        %v2182 = vsel %vm2181, %v418, %v2159
        %v2183 = vsel %vm2181, %v426, %v2160
        %v2184 = vsel %vm2181, %v862, %v2165
        %v2185 = vsel %vm2181, %v866, %v2166
        %v2186 = vsel %vm2181, %v1291, %v2171
        %v2187 = vsel %vm2181, %v1295, %v2172
        %v2188 = vsel %vm2181, %v1720, %v2177
        %v2189 = vsel %vm2181, %v1724, %v2178
        %vm2190 = vcmask 293888
        %v2192 = vsel %vm2190, %v221, 0
        %v2195 = vsel %vm2181, %v2152, 0
        %v2198 = vsel %vm2181, %v2156, 0
        %2200 = vmatprep.subr.mxu0 0.0
        %2201 = vmatpush1.msra.mxu0 0.0
        %2202 = vmatprep.subr.mxu0 0.0
        %2203 = vmatpush1.msra.mxu0 0.0
        %2204 = vmatprep.subr.mxu0 0.0
        %2205 = vmatpush1.msra.mxu0 0.0
        %2206 = vmatprep.subr.mxu0 0.0
        %2207 = vmatpush1.msra.mxu0 0.0
        %2208 = vmatprep.subr.mxu0 0.0
        %2209 = vmatpush1.msra.mxu0 0.0
        %2210 = vmatprep.subr.mxu0 0.0
        %2211 = vmatpush1.msra.mxu0 0.0
        %2212 = vmatprep.subr.mxu0 0.0
        %2213 = vmatpush1.msra.mxu0 0.0
        %2214 = vmatprep.subr.mxu0 0.0
        %2215 = vmatpush1.msra.mxu0 0.0
        %2216 = vmatprep.subr.mxu0 0.0
        %2217 = vmatpush1.msra.mxu0 0.0
        %2218 = vmatprep.subr.mxu0 0.0
        %2219 = vmatpush1.msra.mxu0 0.0
        %2220 = vmatprep.subr.mxu0 0.0
        %2221 = vmatpush1.msra.mxu0 0.0
        %2222 = vmatprep.subr.mxu0 %v2198
        %2223 = vmatpush1.msra.mxu0 %v2195
        %2224 = vmatprep.subr.mxu0 %v2189
        %2225 = vmatpush1.msra.mxu0 %v2188
        %2226 = vmatprep.subr.mxu0 %v2187
        %2227 = vmatpush1.msra.mxu0 %v2186
        %2228 = vmatprep.subr.mxu0 %v2185
        %2229 = vmatpush1.msra.mxu0 %v2184
        %2230 = vmatprep.subr.mxu0 %v2183
        %2231 = vmatpush1.msra.mxu0 %v2182
        %2232 = vmatprep.subr.mxu0 0.0
        %2233 = vmatpush2.msra.mxu0 0.0
        %2234 = vmatprep.subr.mxu0 0.0
        %2235 = vmatpush2.msra.mxu0 0.0
        %2236 = vmatprep.subr.mxu0 0.0
        %2237 = vmatpush2.msra.mxu0 0.0
        %2238 = vmatprep.subr.mxu0 0.0
        %2239 = vmatpush2.msra.mxu0 0.0
        %2240 = vmatprep.subr.mxu0 0.0
        %2241 = vmatpush2.msra.mxu0 0.0
        %2242 = vmatprep.subr.mxu0 0.0
        %2243 = vmatpush2.msra.mxu0 0.0
        %2244 = vmatprep.subr.mxu0 0.0
        %2245 = vmatpush2.msra.mxu0 0.0
        %2246 = vmatprep.subr.mxu0 0.0
        %2247 = vmatpush2.msra.mxu0 0.0
        %2248 = vmatprep.subr.mxu0 0.0
        %2249 = vmatpush2.msra.mxu0 0.0
        %2250 = vmatprep.subr.mxu0 0.0
        %2251 = vmatpush2.msra.mxu0 0.0
        %2252 = vmatprep.subr.mxu0 0.0
        %2253 = vmatpush2.msra.mxu0 0.0
        %2254 = vmatprep.subr.mxu0 0.0
        %2255 = vmatpush2.msra.mxu0 0.0
        %2256 = vmatprep.subr.mxu0 0.0
        %2257 = vmatpush2.msra.mxu0 0.0
        %2258 = vmatprep.subr.mxu0 0.0
        %2259 = vmatpush2.msra.mxu0 0.0
        %2260 = vmatprep.subr.mxu0 0.0
        %2261 = vmatpush2.msra.mxu0 0.0
        %2262 = vmatprep.subr.mxu0 0.0
        %2263 = vmatpush2.msra.mxu0 0.0
        %2264 = vmatprep.mubr.f32.mxu0 0.0
        %2265 = vmatmul.mubr.f32.gmra.mxu0 %v2192
        %v2266 = vpop.f32.mrf.mxu0
        %v2267 = vadd.f32 0.0, %v2266
        %v2268 = vpop.f32.mrf.mxu0
        %v2269 = vadd.f32 0.0, %v2268
        %2270 = vdwg.mxu0
        %2271 = vst [vmem:[%s202] sm:$0xff] %v2267
        %vm2272 = vcmask 556032
        %2273 = vst.msk [vmem:[%s202 + $0x8] sm:$0xff] %vm2272, %v2269
        %v2274 = vsel %vm2272, %v2269, 0.0
        %v2275 = vadd.f32 %v2267, %v2274
        %2276 = vadd.xlane.f32.xlu0 %v2275
        %v2277 = vpop.xlane.xlu0 %2276
        %v2278 = vmul.f32 %v2267, %v2267
        %v2279 = vmul.f32 %v2269, %v2269
        %v2280 = vsel %vm2272, %v2279, 0.0
        %v2281 = vadd.f32 %v2278, %v2280
        %2282 = vadd.xlane.f32.xlu0 %v2281
        %v2283 = vpop.xlane.xlu0 %2282
        %vm2284 = vcmask 7168
        %v2285 = vsel %vm2284, %v2277, %v2283
        %vm2286 = vcmask 15360
        %2287 = vst.msk [vmem:[%s212] sm:$0xff] %vm2286, %v2285
        %s2288 = sand.u32 %s77, 1
        %s2289 = scalar_lea.sflag [#allocation4], %s2288
        %s2290 = sand.u32 %s77, 1
        %s2291 = smul.addr %s2290, 16
        %s2292 = scalar_lea.vmem [#allocation7], %s2291
        %p2293 = scmp.lt.s32.totalorder %s22, 1
        %s2294 = scalar_select %p2293, %s22, 1
        %s2295 = smul.addr %s2294, 8
        %s2296 = scalar_lea.vmem %s3, %s2295
        // Predicated region
        $region37: #{tpu_custom_call.1} parent=27 // pred_check
          %p2297 = pneg %p87
        $region38: #{tpu_custom_call.1} parent=27 // pred_check_branch
          %2299 = sbr.rel (%p2297) target = $region40
        $region39: #{tpu_custom_call.1} parent=27 // pred_region
          %s2301 = ssub.s32 256, 256
          %2302 = vsyncadd %s2289, %s2301
          %s2303 = smul.addr %s22, 2
          %s2304 = smul.addr %s2303, 128
          %s2305 = scalar_lea.hbm %s2, %s2304
          %s2307 = sshll.u32 %s2292, 4
          %s2308 = int_to_ptr.vmem [resolvable:$true] %s2307
          %2310 = dma.vmem_to_hbm [thread:$0]  %s2308, 256, %s2305, %s2289
        $region40: #{tpu_custom_call.1} parent=27 // pred_fallthru
          _
        // Predicated region
        $region41: #{tpu_custom_call.1} parent=27 // pred_check
          %p2311 = pneg %p113
        $region42: #{tpu_custom_call.1} parent=27 // pred_check_branch
          %2313 = sbr.rel (%p2311) target = $region44
        $region43: #{tpu_custom_call.1} parent=27 // pred_region
          _
        $region44: #{tpu_custom_call.1} parent=27 // pred_fallthru
          _
      $region28: #{tpu_custom_call.1} parent=5 // pred_fallthru
        _
      %p2314 = scmp.le.s32.totalorder 2, %s17
      // Predicated region
      $region45: #{tpu_custom_call.1} parent=5 // pred_check
        %p2315 = pneg %p2314
      $region46: #{tpu_custom_call.1} parent=5 // pred_check_branch
        %2317 = sbr.rel (%p2315) target = $region48
      $region47: #{tpu_custom_call.1} parent=5 // pred_region
        %s2318 = ssub.s32 %s17, 2
        // Predicated region
        $region49: #{tpu_custom_call.1} parent=47 // pred_check
          %p2319 = pneg %p93
        $region50: #{tpu_custom_call.1} parent=47 // pred_check_branch
          %2321 = sbr.rel (%p2319) target = $region52
        $region51: #{tpu_custom_call.1} parent=47 // pred_region
          %s2322 = sand.u32 %s78, 1
          %s2323 = scalar_lea.sflag [#allocation4], %s2322
          %s2324 = sand.u32 %s78, 1
          %s2325 = smul.addr %s2324, 16
          %s2326 = scalar_lea.vmem [#allocation7], %s2325
          %2327 = dma.done %s2323, 256
        $region52: #{tpu_custom_call.1} parent=47 // pred_fallthru
          _
        // Predicated region
        $region53: #{tpu_custom_call.1} parent=47 // pred_check
          %p2328 = pneg %p119
        $region54: #{tpu_custom_call.1} parent=47 // pred_check_branch
          %2330 = sbr.rel (%p2328) target = $region56
        $region55: #{tpu_custom_call.1} parent=47 // pred_region
          %p2331 = scmp.lt.s32.totalorder %s23, 1
          %s2332 = scalar_select %p2331, %s23, 1
          %s2333 = smul.addr %s2332, 8
          %s2334 = scalar_lea.vmem %s3, %s2333
        $region56: #{tpu_custom_call.1} parent=47 // pred_fallthru
          _
      $region48: #{tpu_custom_call.1} parent=5 // pred_fallthru
        _
    $region6: #{tpu_custom_call.1} parent=1 // loop_footer
      %s21 = sadd.s32 1, %s17
    $region7: #{tpu_custom_call.1} parent=1 // loop_footer_branch
      %16 = sbr.rel target = $region3
    $region8: #{tpu_custom_call.1} parent=1 // loop_exit
      _
    %2335 = vsyncpa [#allocation3], 1
    %s2336 = scalar_lea.sflag [#allocation3], 1
    %2337 = vsyncpa %s2336, 1
    %2338 = vsyncpa [#allocation6], 1
    %2339 = vsyncpa [#allocation4], 1
    %s2340 = scalar_lea.sflag [#allocation4], 1
    %2341 = vsyncpa %s2340, 1

</llo_original>
